<compile_context>
chip_gen: v6e
topology: v6e:2x2x1
jax: 0.10.0
libtpu: 0.0.40
codegen_flags: <defaults>
</compile_context>

<pallas_src>
import functools

import jax
import jax.numpy as jnp
from jax import lax
from jax.experimental import pallas as pl
from jax.experimental.pallas import tpu as pltpu

KSIZE = 7


def _residual_unit_kernel(xc_ref, xl_ref, xr_ref, w1_ref, w2_ref, prm_ref,
                          o_ref, win_ref, *, dilation, pad, halo, tt, T,
                          compute_dtype, ragged):
    # xc_ref : (1, C, tt)   current tile of x (original columns [t*tt, t*tt+tt))
    # xl_ref : (1, C, halo) halo block just left of the tile (clamped to block 0 at t=0)
    # xr_ref : (1, C, halo) halo block just right of the tile (clamped to last block)
    # w1_ref : (C, 7*C) bf16 dilated-conv weight, taps stacked along the contraction
    # w2_ref : (C, C)   bf16 1x1 conv weight
    # prm_ref: (C, 8) f32 [alpha1, 1/(alpha1+eps), b1, alpha2, 1/(alpha2+eps), b2, 0, 0]
    # o_ref  : (1, C, tt) f32
    # win_ref: (C, tt + 2*halo) bf16 persistent conv-window scratch
    t = pl.program_id(1)
    t0 = t * tt

    prm = prm_ref[...]
    a1 = prm[:, 0:1].astype(compute_dtype)
    i1 = prm[:, 1:2].astype(compute_dtype)
    b1 = prm[:, 2:3]
    a2 = prm[:, 3:4].astype(compute_dtype)
    i2 = prm[:, 4:5].astype(compute_dtype)
    b2 = prm[:, 5:6]

    def snake(v, a, inv):
        s = jnp.sin(a * v)
        return v + inv * (s * s)

    xc = xc_ref[0]                                     # (C, tt) f32, residual source
    xin = xc
    if ragged:                                         # zero the ragged tail (cols >= T)
        col = t0 + lax.broadcasted_iota(jnp.int32, (1, tt), 1)
        xin = jnp.where(col < T, xc, 0.0)

    # Only `pad` boundary columns of each halo block are actually needed.
    xl = xl_ref[0][:, halo - pad:]                     # (C, pad) cols [t0-pad, t0)
    xl = jnp.where(t > 0, xl, 0.0)                     # left signal edge -> zeros
    xr = xr_ref[0][:, :pad]                            # (C, pad) cols [t0+tt, t0+tt+pad)
    colr = t0 + tt + lax.broadcasted_iota(jnp.int32, (1, pad), 1)
    xr = jnp.where(colr < T, xr, 0.0)                  # right edge / ragged tail -> zeros

    # Snake1 (snake(0) == 0, so masked columns behave exactly like zero padding).
    s1c = snake(xin.astype(compute_dtype), a1, i1)     # (C, tt)
    s1l = snake(xl.astype(compute_dtype), a1, i1)      # (C, pad)
    s1r = snake(xr.astype(compute_dtype), a1, i1)      # (C, pad)

    # Conv window in the bf16 scratch; main store lane-aligned at column `halo`.
    win_ref[:, halo:halo + tt] = s1c.astype(jnp.bfloat16)
    win_ref[:, halo - pad:halo] = s1l.astype(jnp.bfloat16)
    win_ref[:, halo + tt:halo + tt + pad] = s1r.astype(jnp.bfloat16)

    # im2col: 7 taps stacked along the contraction -> one MXU matmul with K = 7*C.
    base = halo - pad
    xcol = jnp.concatenate(
        [win_ref[:, base + k * dilation: base + k * dilation + tt]
         for k in range(KSIZE)], axis=0)               # (7*C, tt) bf16

    h = jnp.dot(w1_ref[...], xcol,
                preferred_element_type=jnp.float32) + b1       # (C, tt) f32

    s2 = snake(h.astype(compute_dtype), a2, i2)
    y = jnp.dot(w2_ref[...], s2.astype(jnp.bfloat16),
                preferred_element_type=jnp.float32) + b2       # (C, tt) f32

    # Residual: the current tile already holds the original x columns (lane-aligned).
    o_ref[0] = xc + y


def _device_kind():
    try:
        return jax.devices()[0].device_kind.lower()
    except Exception:
        return ""


def select_compute_dtype():
    kind = _device_kind()
    # bf16 VPU/EUP on v6e / v7x; keep f32 elementwise math on v5e and older.
    return jnp.bfloat16 if ("v6" in kind or "v7" in kind) else jnp.float32


def _vmem_plan():
    kind = _device_kind()
    if "v7" in kind:                     # 64 MiB physical VMEM per TensorCore
        return 16 << 20, 48 << 20
    if "v5" in kind or "v6" in kind:     # 128 MiB physical VMEM
        return 48 << 20, 100 << 20
    return 12 << 20, None                # unknown chip: stay near compiler defaults


def _choose_time_tile(C, T, halo, budget):
    # ~64 B of VMEM per output column per channel covers the double-buffered f32
    # in/out tiles, the bf16 window + im2col slab and the f32/bf16 intermediates;
    # the (possibly double-buffered) resident bf16 weights come off the top.
    w_bytes = 2 * 2 * (KSIZE + 1) * C * C
    tt = max((budget - w_bytes) // (64 * C), halo)
    tt = min(tt, 2048, halo * pl.cdiv(T, halo))
    return max((tt // halo) * halo, halo)


def residual_unit_pallas(x, params, dilation, *, time_tile=None):
    """x: (B, C, T) float32.  params: dict of effective (weight-normed) f32 weights."""
    B, C, T = x.shape
    x = x.astype(jnp.float32)
    pad = (KSIZE - 1) * dilation // 2          # 3 * dilation
    halo = 128 * pl.cdiv(pad, 128)             # lane-aligned halo width >= pad
    budget, vmem_limit = _vmem_plan()
    if time_tile is None:
        tt = _choose_time_tile(C, T, halo, budget)
    else:                                      # round up gracefully instead of asserting
        tt = max(halo, halo * pl.cdiv(int(time_tile), halo))
    nt = pl.cdiv(T, tt)
    hblk = tt // halo                          # halo blocks per time tile
    nrb = pl.cdiv(T, halo)                     # halo blocks covering the signal
    compute_dtype = select_compute_dtype()

    # Fold taps for one wide contraction: w1s[o, k*C + i] = w1[o, i, k]; bf16 for MXU.
    w1s = jnp.transpose(params["w1"], (0, 2, 1)).reshape(C, KSIZE * C).astype(jnp.bfloat16)
    w2 = params["w2"].astype(jnp.bfloat16)
    a1, a2 = params["alpha1"], params["alpha2"]
    prm = jnp.concatenate(                     # packed per-channel params -> one DMA stream
        [a1, 1.0 / (a1 + 1e-9), params["b1"],
         a2, 1.0 / (a2 + 1e-9), params["b2"],
         jnp.zeros((C, 2), jnp.float32)], axis=1).astype(jnp.float32)    # (C, 8)

    kernel = functools.partial(
        _residual_unit_kernel, dilation=dilation, pad=pad, halo=halo, tt=tt,
        T=T, compute_dtype=compute_dtype, ragged=(T % tt != 0))

    cmap = lambda b, t: (0, 0)                 # constant block index -> no re-DMA per step
    out = pl.pallas_call(
        kernel,
        out_shape=jax.ShapeDtypeStruct((B, C, T), jnp.float32),
        grid_spec=pltpu.PrefetchScalarGridSpec(
            num_scalar_prefetch=0,
            grid=(B, nt),
            in_specs=[
                pl.BlockSpec((1, C, tt), lambda b, t: (b, 0, t)),                 # current tile
                pl.BlockSpec((1, C, halo),
                             lambda b, t: (b, 0, jnp.maximum(t * hblk - 1, 0))),  # left halo
                pl.BlockSpec((1, C, halo),
                             lambda b, t: (b, 0, jnp.minimum((t + 1) * hblk, nrb - 1))),  # right halo
                pl.BlockSpec((C, KSIZE * C), cmap),                               # w1 stacked bf16
                pl.BlockSpec((C, C), cmap),                                       # w2 bf16
                pl.BlockSpec((C, 8), cmap),                                       # packed params
            ],
            out_specs=pl.BlockSpec((1, C, tt), lambda b, t: (b, 0, t)),
            scratch_shapes=[pltpu.VMEM((C, tt + 2 * halo), jnp.bfloat16)],
        ),
        compiler_params=pltpu.CompilerParams(
            dimension_semantics=("parallel", "parallel"),
            vmem_limit_bytes=vmem_limit,
        ),
    )(x, x, x, w1s, w2, prm)
    return out


def make_params(key, dim):
    """Deterministic parameter init mirroring ResidualUnit.__init__ shapes.

    weight_norm (dim=0): w = g * v / ||v||_{per out-channel}.  PyTorch init sets
    g = ||v||, so the effective weight equals v at init; we still apply the formula.
    """
    k1, k2, k3, k4 = jax.random.split(key, 4)

    def wn(v):  # v: (Cout, Cin, K)
        norm = jnp.sqrt(jnp.sum(v * v, axis=(1, 2), keepdims=True))
        g = norm
        return g * v / norm

    v1 = 0.1 * jax.random.normal(k1, (dim, dim, KSIZE), jnp.float32)
    v2 = 0.1 * jax.random.normal(k2, (dim, dim, 1), jnp.float32)
    return {
        "alpha1": jnp.ones((dim, 1), jnp.float32),      # Snake1d alpha init = 1
        "w1": wn(v1),                                   # (Cout, Cin, 7) effective f32
        "b1": 0.05 * jax.random.normal(k3, (dim, 1), jnp.float32),
        "alpha2": jnp.ones((dim, 1), jnp.float32),
        "w2": wn(v2)[:, :, 0],                          # (Cout, Cin)
        "b2": 0.05 * jax.random.normal(k4, (dim, 1), jnp.float32),
    }


def residual_unit_reference(x, params, dilation):
    """Pure-JAX f32 reference of the PyTorch forward pass (for verification)."""
    def snake_fn(v, alpha):   # v: (B, C, T), alpha: (C, 1)
        a = alpha[None]
        return v + (1.0 / (a + 1e-9)) * jnp.sin(a * v) ** 2

    pad = (KSIZE - 1) * dilation // 2
    s1 = snake_fn(x, params["alpha1"])
    y = lax.conv_general_dilated(
        s1, params["w1"], window_strides=(1,), padding=[(pad, pad)],
        rhs_dilation=(dilation,), dimension_numbers=("NCH", "OIH", "NCH"))
    y = y + params["b1"][None]
    s2 = snake_fn(y, params["alpha2"])
    y = jnp.einsum("oc,bct->bot", params["w2"], s2) + params["b2"][None]
    p = (x.shape[-1] - y.shape[-1]) // 2
    if p > 0:
        x = x[..., p:-p]
    return x + y


if __name__ == "__main__":
    key = jax.random.PRNGKey(0)
    kx, kp = jax.random.split(key)

    B, C = 2, 16
    params = make_params(kp, C)
    tol = 5e-2 if select_compute_dtype() == jnp.float32 else 1.5e-1

    # Case 1: small T (single tile), dilation 1.
    x1 = jax.random.normal(kx, (B, C, 64), jnp.float32)
    out1 = jax.block_until_ready(residual_unit_pallas(x1, params, dilation=1))
    ref1 = residual_unit_reference(x1, params, 1)
    assert out1.shape == ref1.shape
    err1 = float(jnp.max(jnp.abs(out1 - ref1)))
    assert err1 < tol, f"mismatch vs JAX reference (case 1): {err1}"

    # Case 2: multi-tile, ragged T (not a multiple of 128), dilation 3 -> exercises
    # the left/right halo path across tile boundaries and the masked tail handling.
    x2 = jax.random.normal(kx, (B, C, 300), jnp.float32)
    out2 = jax.block_until_ready(
        residual_unit_pallas(x2, params, dilation=3, time_tile=128))
    ref2 = residual_unit_reference(x2, params, 3)
    assert out2.shape == ref2.shape
    err2 = float(jnp.max(jnp.abs(out2 - ref2)))
    assert err2 < tol, f"mismatch vs JAX reference (case 2): {err2}"

    print("KERNEL_OK")
</pallas_src>

<mosaic_0001>
module attributes {stable_mosaic.version = 11 : i64} {
  func.func @_residual_unit_kernel(%arg0: i32, %arg1: i32, %arg2: memref<1x16x128xf32, #tpu.memory_space<vmem>>, %arg3: memref<1x16x128xf32, #tpu.memory_space<vmem>>, %arg4: memref<1x16x128xf32, #tpu.memory_space<vmem>>, %arg5: memref<16x112xbf16, #tpu.memory_space<vmem>>, %arg6: memref<16x16xbf16, #tpu.memory_space<vmem>>, %arg7: memref<16x8xf32, #tpu.memory_space<vmem>>, %arg8: memref<1x16x128xf32, #tpu.memory_space<vmem>>, %arg9: memref<16x384xbf16, #tpu.memory_space<vmem>>) attributes {dimension_semantics = [#tpu.dimension_semantics<parallel>, #tpu.dimension_semantics<parallel>], iteration_bounds = array<i64: 2, 1>, scalar_prefetch = 0 : i64, scratch_operands = 1 : i64, tpu.core_type = #tpu.core_type<tc>, window_params = [{transform_indices = @transform_0, window_bounds = array<i64: 1, 16, 128>}, {transform_indices = @transform_1, window_bounds = array<i64: 1, 16, 128>}, {transform_indices = @transform_2, window_bounds = array<i64: 1, 16, 128>}, {pipeline_mode = #tpu.pipeline_mode<synchronous>, transform_indices = @transform_3, window_bounds = array<i64: 16, 112>}, {pipeline_mode = #tpu.pipeline_mode<synchronous>, transform_indices = @transform_4, window_bounds = array<i64: 16, 16>}, {pipeline_mode = #tpu.pipeline_mode<synchronous>, transform_indices = @transform_5, window_bounds = array<i64: 16, 8>}, {transform_indices = @transform_6, window_bounds = array<i64: 1, 16, 128>}]} {
    %c128_i32 = arith.constant 128 : i32
    %0 = arith.muli %arg1, %c128_i32 : i32
    %c0 = arith.constant 0 : index
    %c0_0 = arith.constant 0 : index
    %1 = vector.load %arg7[%c0, %c0_0] : memref<16x8xf32, #tpu.memory_space<vmem>>, vector<16x8xf32>
    %2 = vector.extract_strided_slice %1 {offsets = [0, 0], sizes = [16, 1], strides = [1, 1]} : vector<16x8xf32> to vector<16x1xf32>
    %3 = vector.extract_strided_slice %1 {offsets = [0, 1], sizes = [16, 1], strides = [1, 1]} : vector<16x8xf32> to vector<16x1xf32>
    %4 = vector.extract_strided_slice %1 {offsets = [0, 2], sizes = [16, 1], strides = [1, 1]} : vector<16x8xf32> to vector<16x1xf32>
    %5 = vector.extract_strided_slice %1 {offsets = [0, 3], sizes = [16, 1], strides = [1, 1]} : vector<16x8xf32> to vector<16x1xf32>
    %6 = vector.extract_strided_slice %1 {offsets = [0, 4], sizes = [16, 1], strides = [1, 1]} : vector<16x8xf32> to vector<16x1xf32>
    %7 = vector.extract_strided_slice %1 {offsets = [0, 5], sizes = [16, 1], strides = [1, 1]} : vector<16x8xf32> to vector<16x1xf32>
    %c0_1 = arith.constant 0 : index
    %c0_2 = arith.constant 0 : index
    %c0_3 = arith.constant 0 : index
    %8 = vector.load %arg2[%c0_1, %c0_2, %c0_3] : memref<1x16x128xf32, #tpu.memory_space<vmem>>, vector<1x16x128xf32>
    %9 = vector.shape_cast %8 : vector<1x16x128xf32> to vector<16x128xf32>
    %10 = tpu.iota {dimensions = array<i32: 1>} : vector<1x128xi32>
    %11 = vector.broadcast %0 : i32 to vector<1x128xi32>
    %12 = arith.addi %11, %10 : vector<1x128xi32>
    %c64_i32 = arith.constant 64 : i32
    %13 = vector.broadcast %c64_i32 : i32 to vector<1x128xi32>
    %14 = arith.cmpi slt, %12, %13 : vector<1x128xi32>
    %cst = arith.constant 0.000000e+00 : f32
    %15 = vector.shape_cast %14 : vector<1x128xi1> to vector<1x128xi1>
    %16 = vector.broadcast %15 : vector<1x128xi1> to vector<16x128xi1>
    %17 = vector.broadcast %cst : f32 to vector<16x128xf32>
    %18 = arith.select %16, %9, %17 : vector<16x128xi1>, vector<16x128xf32>
    %c0_4 = arith.constant 0 : index
    %c0_5 = arith.constant 0 : index
    %c0_6 = arith.constant 0 : index
    %19 = vector.load %arg3[%c0_4, %c0_5, %c0_6] : memref<1x16x128xf32, #tpu.memory_space<vmem>>, vector<1x16x128xf32>
    %20 = vector.shape_cast %19 : vector<1x16x128xf32> to vector<16x128xf32>
    %21 = vector.extract_strided_slice %20 {offsets = [0, 125], sizes = [16, 3], strides = [1, 1]} : vector<16x128xf32> to vector<16x3xf32>
    %c0_i32 = arith.constant 0 : i32
    %22 = arith.cmpi sgt, %arg1, %c0_i32 : i32
    %cst_7 = arith.constant 0.000000e+00 : f32
    %23 = vector.broadcast %cst_7 : f32 to vector<16x3xf32>
    %24 = arith.select %22, %21, %23 : vector<16x3xf32>
    %c0_8 = arith.constant 0 : index
    %c0_9 = arith.constant 0 : index
    %c0_10 = arith.constant 0 : index
    %25 = vector.load %arg4[%c0_8, %c0_9, %c0_10] : memref<1x16x128xf32, #tpu.memory_space<vmem>>, vector<1x16x128xf32>
    %26 = vector.shape_cast %25 : vector<1x16x128xf32> to vector<16x128xf32>
    %27 = vector.extract_strided_slice %26 {offsets = [0, 0], sizes = [16, 3], strides = [1, 1]} : vector<16x128xf32> to vector<16x3xf32>
    %c128_i32_11 = arith.constant 128 : i32
    %28 = arith.addi %0, %c128_i32_11 : i32
    %29 = tpu.iota {dimensions = array<i32: 1>} : vector<1x3xi32>
    %30 = vector.broadcast %28 : i32 to vector<1x3xi32>
    %31 = arith.addi %30, %29 : vector<1x3xi32>
    %c64_i32_12 = arith.constant 64 : i32
    %32 = vector.broadcast %c64_i32_12 : i32 to vector<1x3xi32>
    %33 = arith.cmpi slt, %31, %32 : vector<1x3xi32>
    %cst_13 = arith.constant 0.000000e+00 : f32
    %34 = vector.shape_cast %33 : vector<1x3xi1> to vector<1x3xi1>
    %35 = vector.broadcast %34 : vector<1x3xi1> to vector<16x3xi1>
    %36 = vector.broadcast %cst_13 : f32 to vector<16x3xf32>
    %37 = arith.select %35, %27, %36 : vector<16x3xi1>, vector<16x3xf32>
    %38 = vector.broadcast %2 : vector<16x1xf32> to vector<16x128xf32>
    %39 = arith.mulf %38, %18 : vector<16x128xf32>
    %40 = math.sin %39 : vector<16x128xf32>
    %41 = arith.mulf %40, %40 : vector<16x128xf32>
    %42 = vector.broadcast %3 : vector<16x1xf32> to vector<16x128xf32>
    %43 = arith.mulf %42, %41 : vector<16x128xf32>
    %44 = arith.addf %18, %43 : vector<16x128xf32>
    %45 = vector.broadcast %2 : vector<16x1xf32> to vector<16x3xf32>
    %46 = arith.mulf %45, %24 : vector<16x3xf32>
    %47 = math.sin %46 : vector<16x3xf32>
    %48 = arith.mulf %47, %47 : vector<16x3xf32>
    %49 = vector.broadcast %3 : vector<16x1xf32> to vector<16x3xf32>
    %50 = arith.mulf %49, %48 : vector<16x3xf32>
    %51 = arith.addf %24, %50 : vector<16x3xf32>
    %52 = vector.broadcast %2 : vector<16x1xf32> to vector<16x3xf32>
    %53 = arith.mulf %52, %37 : vector<16x3xf32>
    %54 = math.sin %53 : vector<16x3xf32>
    %55 = arith.mulf %54, %54 : vector<16x3xf32>
    %56 = vector.broadcast %3 : vector<16x1xf32> to vector<16x3xf32>
    %57 = arith.mulf %56, %55 : vector<16x3xf32>
    %58 = arith.addf %37, %57 : vector<16x3xf32>
    %59 = arith.truncf %44 : vector<16x128xf32> to vector<16x128xbf16>
    %c0_14 = arith.constant 0 : index
    %c128 = arith.constant 128 : index
    %60 = vector.load %arg9[%c0_14, %c128] : memref<16x384xbf16, #tpu.memory_space<vmem>>, vector<16x128xbf16>
    tpu.vector_store %arg9[%c0_14, %c128], %59 {strides = array<i32>} : memref<16x384xbf16, #tpu.memory_space<vmem>>, vector<16x128xbf16>,
    %61 = arith.truncf %51 : vector<16x3xf32> to vector<16x3xbf16>
    %c0_15 = arith.constant 0 : index
    %c125 = arith.constant 125 : index
    %62 = vector.load %arg9[%c0_15, %c125] : memref<16x384xbf16, #tpu.memory_space<vmem>>, vector<16x3xbf16>
    tpu.vector_store %arg9[%c0_15, %c125], %61 {strides = array<i32>} : memref<16x384xbf16, #tpu.memory_space<vmem>>, vector<16x3xbf16>,
    %63 = arith.truncf %58 : vector<16x3xf32> to vector<16x3xbf16>
    %c0_16 = arith.constant 0 : index
    %c256 = arith.constant 256 : index
    %64 = vector.load %arg9[%c0_16, %c256] : memref<16x384xbf16, #tpu.memory_space<vmem>>, vector<16x3xbf16>
    tpu.vector_store %arg9[%c0_16, %c256], %63 {strides = array<i32>} : memref<16x384xbf16, #tpu.memory_space<vmem>>, vector<16x3xbf16>,
    %c0_17 = arith.constant 0 : index
    %c125_18 = arith.constant 125 : index
    %65 = vector.load %arg9[%c0_17, %c125_18] : memref<16x384xbf16, #tpu.memory_space<vmem>>, vector<16x128xbf16>
    %c0_19 = arith.constant 0 : index
    %c126 = arith.constant 126 : index
    %66 = vector.load %arg9[%c0_19, %c126] : memref<16x384xbf16, #tpu.memory_space<vmem>>, vector<16x128xbf16>
    %c0_20 = arith.constant 0 : index
    %c127 = arith.constant 127 : index
    %67 = vector.load %arg9[%c0_20, %c127] : memref<16x384xbf16, #tpu.memory_space<vmem>>, vector<16x128xbf16>
    %c0_21 = arith.constant 0 : index
    %c128_22 = arith.constant 128 : index
    %68 = vector.load %arg9[%c0_21, %c128_22] : memref<16x384xbf16, #tpu.memory_space<vmem>>, vector<16x128xbf16>
    %c0_23 = arith.constant 0 : index
    %c129 = arith.constant 129 : index
    %69 = vector.load %arg9[%c0_23, %c129] : memref<16x384xbf16, #tpu.memory_space<vmem>>, vector<16x128xbf16>
    %c0_24 = arith.constant 0 : index
    %c130 = arith.constant 130 : index
    %70 = vector.load %arg9[%c0_24, %c130] : memref<16x384xbf16, #tpu.memory_space<vmem>>, vector<16x128xbf16>
    %c0_25 = arith.constant 0 : index
    %c131 = arith.constant 131 : index
    %71 = vector.load %arg9[%c0_25, %c131] : memref<16x384xbf16, #tpu.memory_space<vmem>>, vector<16x128xbf16>
    %72 = tpu.concatenate %65, %66, %67, %68, %69, %70, %71 in 0 : vector<16x128xbf16>, vector<16x128xbf16>, vector<16x128xbf16>, vector<16x128xbf16>, vector<16x128xbf16>, vector<16x128xbf16>, vector<16x128xbf16> -> vector<112x128xbf16>
    %c0_26 = arith.constant 0 : index
    %c0_27 = arith.constant 0 : index
    %73 = vector.load %arg5[%c0_26, %c0_27] : memref<16x112xbf16, #tpu.memory_space<vmem>>, vector<16x112xbf16>
    %cst_28 = arith.constant dense<0.000000e+00> : vector<16x128xf32>
    %74 = tpu.matmul %73, %72, %cst_28 {dimension_numbers = #tpu.dot_dimension_numbers<[1], [0], [0], [1], [0, 0, 1, 1], [], []>} : vector<16x112xbf16>, vector<112x128xbf16>, vector<16x128xf32> -> vector<16x128xf32>
    %75 = vector.broadcast %4 : vector<16x1xf32> to vector<16x128xf32>
    %76 = arith.addf %74, %75 : vector<16x128xf32>
    %77 = vector.broadcast %5 : vector<16x1xf32> to vector<16x128xf32>
    %78 = arith.mulf %77, %76 : vector<16x128xf32>
    %79 = math.sin %78 : vector<16x128xf32>
    %80 = arith.mulf %79, %79 : vector<16x128xf32>
    %81 = vector.broadcast %6 : vector<16x1xf32> to vector<16x128xf32>
    %82 = arith.mulf %81, %80 : vector<16x128xf32>
    %83 = arith.addf %76, %82 : vector<16x128xf32>
    %c0_29 = arith.constant 0 : index
    %c0_30 = arith.constant 0 : index
    %84 = vector.load %arg6[%c0_29, %c0_30] : memref<16x16xbf16, #tpu.memory_space<vmem>>, vector<16x16xbf16>
    %85 = arith.truncf %83 : vector<16x128xf32> to vector<16x128xbf16>
    %cst_31 = arith.constant dense<0.000000e+00> : vector<16x128xf32>
    %86 = tpu.matmul %84, %85, %cst_31 {dimension_numbers = #tpu.dot_dimension_numbers<[1], [0], [0], [1], [0, 0, 1, 1], [], []>} : vector<16x16xbf16>, vector<16x128xbf16>, vector<16x128xf32> -> vector<16x128xf32>
    %87 = vector.broadcast %7 : vector<16x1xf32> to vector<16x128xf32>
    %88 = arith.addf %86, %87 : vector<16x128xf32>
    %89 = arith.addf %9, %88 : vector<16x128xf32>
    %c0_32 = arith.constant 0 : index
    %c0_33 = arith.constant 0 : index
    %c0_34 = arith.constant 0 : index
    %90 = vector.load %arg8[%c0_32, %c0_33, %c0_34] : memref<1x16x128xf32, #tpu.memory_space<vmem>>, vector<1x16x128xf32>
    %91 = vector.shape_cast %90 : vector<1x16x128xf32> to vector<16x128xf32>
    %92 = vector.shape_cast %89 : vector<16x128xf32> to vector<1x16x128xf32>
    tpu.vector_store %arg8[%c0_32, %c0_33, %c0_34], %92 {strides = array<i32>} : memref<1x16x128xf32, #tpu.memory_space<vmem>>, vector<1x16x128xf32>,
    return
  }
  func.func @transform_0(%arg0: i32, %arg1: i32) -> (i32, i32, i32) {
    %c0_i32 = arith.constant 0 : i32
    %c0_i32_0 = arith.constant 0 : i32
    return %arg0, %c0_i32, %arg1 : i32, i32, i32
  }
  func.func @transform_1(%arg0: i32, %arg1: i32) -> (i32, i32, i32) {
    %c1_i32 = arith.constant 1 : i32
    %0 = arith.muli %arg1, %c1_i32 : i32
    %c1_i32_0 = arith.constant 1 : i32
    %1 = arith.subi %0, %c1_i32_0 : i32
    %c0_i32 = arith.constant 0 : i32
    %2 = arith.maxsi %1, %c0_i32 : i32
    %c0_i32_1 = arith.constant 0 : i32
    %c0_i32_2 = arith.constant 0 : i32
    return %arg0, %c0_i32_1, %2 : i32, i32, i32
  }
  func.func @transform_2(%arg0: i32, %arg1: i32) -> (i32, i32, i32) {
    %c1_i32 = arith.constant 1 : i32
    %0 = arith.addi %arg1, %c1_i32 : i32
    %c1_i32_0 = arith.constant 1 : i32
    %1 = arith.muli %0, %c1_i32_0 : i32
    %c0_i32 = arith.constant 0 : i32
    %2 = arith.minsi %1, %c0_i32 : i32
    %c0_i32_1 = arith.constant 0 : i32
    %c0_i32_2 = arith.constant 0 : i32
    return %arg0, %c0_i32_1, %2 : i32, i32, i32
  }
  func.func @transform_3(%arg0: i32, %arg1: i32) -> (i32, i32) {
    %c0_i32 = arith.constant 0 : i32
    %c0_i32_0 = arith.constant 0 : i32
    %c0_i32_1 = arith.constant 0 : i32
    return %c0_i32, %c0_i32_0 : i32, i32
  }
  func.func @transform_4(%arg0: i32, %arg1: i32) -> (i32, i32) {
    %c0_i32 = arith.constant 0 : i32
    %c0_i32_0 = arith.constant 0 : i32
    %c0_i32_1 = arith.constant 0 : i32
    return %c0_i32, %c0_i32_0 : i32, i32
  }
  func.func @transform_5(%arg0: i32, %arg1: i32) -> (i32, i32) {
    %c0_i32 = arith.constant 0 : i32
    %c0_i32_0 = arith.constant 0 : i32
    %c0_i32_1 = arith.constant 0 : i32
    return %c0_i32, %c0_i32_0 : i32, i32
  }
  func.func @transform_6(%arg0: i32, %arg1: i32) -> (i32, i32, i32) {
    %c0_i32 = arith.constant 0 : i32
    %c0_i32_0 = arith.constant 0 : i32
    return %arg0, %c0_i32, %arg1 : i32, i32, i32
  }
}

</mosaic_0001>

<llo_original>
// kernel: tpu_custom_call.1
$region0: #{tpu_custom_call.1}
  #allocation0 [shape = 'u32[]', space=smem, size = 0x4, offset = 0x4, fixed_abs, tag = 'smem constant byte address 0x4 - core index']
  #allocation1 [shape = 'u32[144,128]{1,0:T(1,128)}', space=vmem, size = 0x12000, scoped, tag = 'internal scratch']
  #allocation2 [shape = 'bf16[16,384]{1,0:T(8,128)(2,1)}', space=vmem, size = 0x3000, scoped, tag = 'scratch operand']
  %s0 = inlined_call_operand.hbm [shape: f32[2,16,64], index: 0, kind: input, shape index: {}]
  %s1 = inlined_call_operand.hbm [shape: f32[2,16,64], index: 1, kind: input, shape index: {}]
  %s2 = inlined_call_operand.hbm [shape: f32[2,16,64], index: 2, kind: input, shape index: {}]
  %s3 = inlined_call_operand.vmem [shape: bf16[16,112], index: 3, kind: input, shape index: {}]
  %s4 = inlined_call_operand.vmem [shape: bf16[16,16], index: 4, kind: input, shape index: {}]
  %s5 = inlined_call_operand.vmem [shape: f32[16,8], index: 5, kind: input, shape index: {}]
  %s6 = inlined_call_operand.hbm [shape: f32[2,16,64], index: 6, kind: output, shape index: {}]
  %s7 = sld [smem:[#allocation0]]
  $region69: #{tpu_custom_call.1} parent=0
    _
  %s9 = ssub.s32 1, %s7
  %s10 = scalar_select 0, %s9, %s7
  $region1: #{tpu_custom_call.1} parent=0
    #allocation3 [shape = 'u8[16384]{0}', space=vmem, size = 0x4000, scoped, tag = 'input window, operand 0']
    #allocation4 [shape = 's32[2]{0}', space=sflag, size = 0x8, scoped, tag = 'scoped memory for tpu_custom_call.1']
    #allocation5 [shape = 's32[2]{0}', space=sflag, size = 0x8, scoped, tag = 'scoped memory for tpu_custom_call.1']
    #allocation6 [shape = 'u8[16384]{0}', space=vmem, size = 0x4000, scoped, tag = 'input window, operand 1']
    #allocation7 [shape = 's32[2]{0}', space=sflag, size = 0x8, scoped, tag = 'scoped memory for tpu_custom_call.1']
    #allocation8 [shape = 'u8[16384]{0}', space=vmem, size = 0x4000, scoped, tag = 'input window, operand 2']
    #allocation9 [shape = 'u8[16384]{0}', space=vmem, size = 0x4000, scoped, tag = 'output window, operand 0']
    %11 = vsyncpa [#allocation4], 0
    %s12 = scalar_lea.sflag [#allocation4], 1
    %13 = vsyncpa %s12, 0
    %14 = vsyncpa [#allocation7], 0
    %s15 = scalar_lea.sflag [#allocation7], 1
    %16 = vsyncpa %s15, 0
    %17 = vsyncpa [#allocation5], 0
    %s18 = scalar_lea.sflag [#allocation5], 1
    %19 = vsyncpa %s18, 0
    loop: start=0, step=1, limit=4
    $region2: #{tpu_custom_call.1} parent=1 // loop_pre_header
      _
    $region3: #{tpu_custom_call.1} parent=1 // loop_header
      %s21 = sphi 0, %s25
      %p22 = scmp.ge.s32.totalorder %s21, 4
      %s28 = sphi 0, %s40
      %s29 = sphi 0, %s36
      %s30 = sphi 0, %s28
      %s31 = sphi 0, %s29
      %s32 = sphi 0, %s30
      %s33 = sphi 0, %s31
      %s45 = sphi 0, %s47
      %s48 = sphi 0, %s45
      %s49 = sphi 0, %s48
      %s65 = sphi 0, %s49
      %s79 = sphi 0, %s81
      %s82 = sphi 0, %s79
      %s83 = sphi 0, %s82
      %s99 = sphi 0, %s83
      %s113 = sphi 0, %s115
      %s116 = sphi 0, %s113
      %s117 = sphi 0, %s116
      %s133 = sphi 0, %s117
      %s137 = sphi 0, %s137
      %s139 = sphi 0, %s137
      %s140 = sphi 0, %s139
      %s154 = sphi 0, %s140
      %s158 = sphi 0, %s158
      %s160 = sphi 0, %s158
      %s161 = sphi 0, %s160
      %s175 = sphi 0, %s161
      %s179 = sphi 0, %s179
      %s181 = sphi 0, %s179
      %s182 = sphi 0, %s181
      %s196 = sphi 0, %s182
      %s204 = sphi 0, %s206
      %s207 = sphi 0, %s204
      %s208 = sphi 0, %s207
      %s224 = sphi 0, %s208
    $region4: #{tpu_custom_call.1} parent=1 // loop_header_branch
      %24 = sbr.rel (%p22) target = $region8
    $region5: #{tpu_custom_call.1} parent=1 // loop_body
      %s26 = ssub.s32 %s21, 1
      %s27 = ssub.s32 %s21, 2
      %s34 = sadd.s32 1, %s29
      %p35 = scmp.ge.s32.totalorder %s34, 1
      %s36 = scalar_select %p35, 0, %s34
      %s37 = sadd.s32 1, %s28
      %s38 = scalar_select %p35, %s37, %s28
      %p39 = scmp.ge.s32.totalorder %s38, 2
      %s40 = scalar_select %p39, 0, %s38
      %s41 = ssub.s32 %s28, %s40
      %s42 = ssub.s32 %s29, %s36
      %s43 = sor.u32 %s41, %s42
      %p44 = scmp.eq.s32.totalorder %s43, 0
      %s46 = sadd.s32 %s45, 1
      %s47 = scalar_select %p44, %s45, %s46
      %p50 = pneg %p44
      %p51 = scmp.eq.s32.totalorder %s21, 1
      %p52 = por %p50, %p51
      %p53 = scmp.ne.s32.totalorder %s45, %s48
      %p54 = scmp.eq.s32.totalorder %s21, 0
      %p55 = por %p53, %p54
      %p56 = scmp.ne.s32.totalorder %s45, %s48
      %p57 = scmp.eq.s32.totalorder %s26, 1
      %p58 = por %p56, %p57
      %p59 = scmp.ne.s32.totalorder %s48, %s49
      %p60 = scmp.eq.s32.totalorder %s26, 0
      %p61 = por %p59, %p60
      %p62 = scmp.ne.s32.totalorder %s48, %s49
      %p63 = scmp.eq.s32.totalorder %s27, 1
      %p64 = por %p62, %p63
      %p66 = scmp.ne.s32.totalorder %s49, %s65
      %p67 = scmp.eq.s32.totalorder %s27, 0
      %p68 = por %p66, %p67
      %s69 = ssub.s32 %s29, 1
      %p70 = scmp.gt.s32.totalorder %s69, 0
      %s71 = scalar_select %p70, %s69, 0
      %s72 = ssub.s32 %s36, 1
      %p73 = scmp.gt.s32.totalorder %s72, 0
      %s74 = scalar_select %p73, %s72, 0
      %s75 = ssub.s32 %s28, %s40
      %s76 = ssub.s32 %s71, %s74
      %s77 = sor.u32 %s75, %s76
      %p78 = scmp.eq.s32.totalorder %s77, 0
      %s80 = sadd.s32 %s79, 1
      %s81 = scalar_select %p78, %s79, %s80
      %p84 = pneg %p78
      %p85 = scmp.eq.s32.totalorder %s21, 1
      %p86 = por %p84, %p85
      %p87 = scmp.ne.s32.totalorder %s79, %s82
      %p88 = scmp.eq.s32.totalorder %s21, 0
      %p89 = por %p87, %p88
      %p90 = scmp.ne.s32.totalorder %s79, %s82
      %p91 = scmp.eq.s32.totalorder %s26, 1
      %p92 = por %p90, %p91
      %p93 = scmp.ne.s32.totalorder %s82, %s83
      %p94 = scmp.eq.s32.totalorder %s26, 0
      %p95 = por %p93, %p94
      %p96 = scmp.ne.s32.totalorder %s82, %s83
      %p97 = scmp.eq.s32.totalorder %s27, 1
      %p98 = por %p96, %p97
      %p100 = scmp.ne.s32.totalorder %s83, %s99
      %p101 = scmp.eq.s32.totalorder %s27, 0
      %p102 = por %p100, %p101
      %s103 = sadd.s32 %s29, 1
      %p104 = scmp.lt.s32.totalorder %s103, 0
      %s105 = scalar_select %p104, %s103, 0
      %s106 = sadd.s32 %s36, 1
      %p107 = scmp.lt.s32.totalorder %s106, 0
      %s108 = scalar_select %p107, %s106, 0
      %s109 = ssub.s32 %s28, %s40
      %s110 = ssub.s32 %s105, %s108
      %s111 = sor.u32 %s109, %s110
      %p112 = scmp.eq.s32.totalorder %s111, 0
      %s114 = sadd.s32 %s113, 1
      %s115 = scalar_select %p112, %s113, %s114
      %p118 = pneg %p112
      %p119 = scmp.eq.s32.totalorder %s21, 1
      %p120 = por %p118, %p119
      %p121 = scmp.ne.s32.totalorder %s113, %s116
      %p122 = scmp.eq.s32.totalorder %s21, 0
      %p123 = por %p121, %p122
      %p124 = scmp.ne.s32.totalorder %s113, %s116
      %p125 = scmp.eq.s32.totalorder %s26, 1
      %p126 = por %p124, %p125
      %p127 = scmp.ne.s32.totalorder %s116, %s117
      %p128 = scmp.eq.s32.totalorder %s26, 0
      %p129 = por %p127, %p128
      %p130 = scmp.ne.s32.totalorder %s116, %s117
      %p131 = scmp.eq.s32.totalorder %s27, 1
      %p132 = por %p130, %p131
      %p134 = scmp.ne.s32.totalorder %s117, %s133
      %p135 = scmp.eq.s32.totalorder %s27, 0
      %p136 = por %p134, %p135
      %s138 = sadd.s32 %s137, 1
      %p141 = scmp.eq.s32.totalorder %s21, 1
      %p142 = scmp.ne.s32.totalorder %s137, %s139
      %p143 = scmp.eq.s32.totalorder %s21, 0
      %p144 = por %p142, %p143
      %p145 = scmp.ne.s32.totalorder %s137, %s139
      %p146 = scmp.eq.s32.totalorder %s26, 1
      %p147 = por %p145, %p146
      %p148 = scmp.ne.s32.totalorder %s139, %s140
      %p149 = scmp.eq.s32.totalorder %s26, 0
      %p150 = por %p148, %p149
      %p151 = scmp.ne.s32.totalorder %s139, %s140
      %p152 = scmp.eq.s32.totalorder %s27, 1
      %p153 = por %p151, %p152
      %p155 = scmp.ne.s32.totalorder %s140, %s154
      %p156 = scmp.eq.s32.totalorder %s27, 0
      %p157 = por %p155, %p156
      %s159 = sadd.s32 %s158, 1
      %p162 = scmp.eq.s32.totalorder %s21, 1
      %p163 = scmp.ne.s32.totalorder %s158, %s160
      %p164 = scmp.eq.s32.totalorder %s21, 0
      %p165 = por %p163, %p164
      %p166 = scmp.ne.s32.totalorder %s158, %s160
      %p167 = scmp.eq.s32.totalorder %s26, 1
      %p168 = por %p166, %p167
      %p169 = scmp.ne.s32.totalorder %s160, %s161
      %p170 = scmp.eq.s32.totalorder %s26, 0
      %p171 = por %p169, %p170
      %p172 = scmp.ne.s32.totalorder %s160, %s161
      %p173 = scmp.eq.s32.totalorder %s27, 1
      %p174 = por %p172, %p173
      %p176 = scmp.ne.s32.totalorder %s161, %s175
      %p177 = scmp.eq.s32.totalorder %s27, 0
      %p178 = por %p176, %p177
      %s180 = sadd.s32 %s179, 1
      %p183 = scmp.eq.s32.totalorder %s21, 1
      %p184 = scmp.ne.s32.totalorder %s179, %s181
      %p185 = scmp.eq.s32.totalorder %s21, 0
      %p186 = por %p184, %p185
      %p187 = scmp.ne.s32.totalorder %s179, %s181
      %p188 = scmp.eq.s32.totalorder %s26, 1
      %p189 = por %p187, %p188
      %p190 = scmp.ne.s32.totalorder %s181, %s182
      %p191 = scmp.eq.s32.totalorder %s26, 0
      %p192 = por %p190, %p191
      %p193 = scmp.ne.s32.totalorder %s181, %s182
      %p194 = scmp.eq.s32.totalorder %s27, 1
      %p195 = por %p193, %p194
      %p197 = scmp.ne.s32.totalorder %s182, %s196
      %p198 = scmp.eq.s32.totalorder %s27, 0
      %p199 = por %p197, %p198
      %s200 = ssub.s32 %s28, %s40
      %s201 = ssub.s32 %s29, %s36
      %s202 = sor.u32 %s200, %s201
      %p203 = scmp.eq.s32.totalorder %s202, 0
      %s205 = sadd.s32 %s204, 1
      %s206 = scalar_select %p203, %s204, %s205
      %p209 = pneg %p203
      %p210 = scmp.eq.s32.totalorder %s21, 1
      %p211 = por %p209, %p210
      %p212 = scmp.ne.s32.totalorder %s204, %s207
      %p213 = scmp.eq.s32.totalorder %s21, 0
      %p214 = por %p212, %p213
      %p215 = scmp.ne.s32.totalorder %s204, %s207
      %p216 = scmp.eq.s32.totalorder %s26, 1
      %p217 = por %p215, %p216
      %p218 = scmp.ne.s32.totalorder %s207, %s208
      %p219 = scmp.eq.s32.totalorder %s26, 0
      %p220 = por %p218, %p219
      %p221 = scmp.ne.s32.totalorder %s207, %s208
      %p222 = scmp.eq.s32.totalorder %s27, 1
      %p223 = por %p221, %p222
      %p225 = scmp.ne.s32.totalorder %s208, %s224
      %p226 = scmp.eq.s32.totalorder %s27, 0
      %p227 = por %p225, %p226
      %p228 = scmp.le.s32.totalorder 1, %s21
      %p229 = scmp.lt.s32.totalorder %s21, 3
      %p230 = pnand %p228, %p229
      %p231 = pneg %p230
      // Predicated region
      $region9: #{tpu_custom_call.1} parent=5 // pred_check
        _
      $region10: #{tpu_custom_call.1} parent=5 // pred_check_branch
        %233 = sbr.rel (%p230) target = $region12
      $region11: #{tpu_custom_call.1} parent=5 // pred_region
        %s234 = ssub.s32 %s21, 1
        // Predicated region
        $region13: #{tpu_custom_call.1} parent=11 // pred_check
          %p235 = pneg %p150
        $region14: #{tpu_custom_call.1} parent=11 // pred_check_branch
          %237 = sbr.rel (%p235) target = $region16
        $region15: #{tpu_custom_call.1} parent=11 // pred_region
          _
        $region16: #{tpu_custom_call.1} parent=11 // pred_fallthru
          _
        // Predicated region
        $region17: #{tpu_custom_call.1} parent=11 // pred_check
          %p238 = pneg %p171
        $region18: #{tpu_custom_call.1} parent=11 // pred_check_branch
          %240 = sbr.rel (%p238) target = $region20
        $region19: #{tpu_custom_call.1} parent=11 // pred_region
          _
        $region20: #{tpu_custom_call.1} parent=11 // pred_fallthru
          _
        // Predicated region
        $region21: #{tpu_custom_call.1} parent=11 // pred_check
          %p241 = pneg %p192
        $region22: #{tpu_custom_call.1} parent=11 // pred_check_branch
          %243 = sbr.rel (%p241) target = $region24
        $region23: #{tpu_custom_call.1} parent=11 // pred_region
          _
        $region24: #{tpu_custom_call.1} parent=11 // pred_fallthru
          _
      $region12: #{tpu_custom_call.1} parent=5 // pred_fallthru
        _
      %p244 = scmp.lt.s32.totalorder %s21, 2
      // Predicated region
      $region25: #{tpu_custom_call.1} parent=5 // pred_check
        %p245 = pneg %p244
      $region26: #{tpu_custom_call.1} parent=5 // pred_check_branch
        %247 = sbr.rel (%p245) target = $region28
      $region27: #{tpu_custom_call.1} parent=5 // pred_region
        // Predicated region
        $region29: #{tpu_custom_call.1} parent=27 // pred_check
          %p248 = pneg %p55
        $region30: #{tpu_custom_call.1} parent=27 // pred_check_branch
          %250 = sbr.rel (%p248) target = $region32
        $region31: #{tpu_custom_call.1} parent=27 // pred_region
          %s251 = sand.u32 %s45, 1
          %s252 = scalar_lea.sflag [#allocation4], %s251
          %s253 = sand.u32 %s45, 1
          %s254 = smul.addr %s253, 16
          %s255 = scalar_lea.vmem [#allocation3], %s254
          %s257 = ssub.s32 256, 256
          %258 = vsyncadd %s252, %s257
          %s259 = smul.addr %s28, 2
          %s260 = sadd.s32 %s29, %s259
          %s261 = smul.addr %s260, 128
          %s262 = scalar_lea.hbm %s0, %s261
          %s263 = sshll.u32 %s255, 4
          %s264 = int_to_ptr.vmem [resolvable:$true] %s263
          %269 = dma.hbm_to_vmem [thread:$0]  %s262, 256, %s264, %s252, 128, 128, 8
        $region32: #{tpu_custom_call.1} parent=27 // pred_fallthru
          _
        // Predicated region
        $region33: #{tpu_custom_call.1} parent=27 // pred_check
          %p270 = pneg %p89
        $region34: #{tpu_custom_call.1} parent=27 // pred_check_branch
          %272 = sbr.rel (%p270) target = $region36
        $region35: #{tpu_custom_call.1} parent=27 // pred_region
          %s273 = sand.u32 %s21, 1
          %s274 = scalar_lea.sflag [#allocation7], %s273
          %s275 = sand.u32 %s79, 1
          %s276 = smul.addr %s275, 16
          %s277 = scalar_lea.vmem [#allocation6], %s276
          %s278 = ssub.s32 %s29, 1
          %p279 = scmp.gt.s32.totalorder %s278, 0
          %s280 = scalar_select %p279, %s278, 0
          %s282 = ssub.s32 256, 256
          %283 = vsyncadd %s274, %s282
          %s284 = smul.addr %s28, 2
          %s285 = sadd.s32 %s280, %s284
          %s286 = smul.addr %s285, 128
          %s287 = scalar_lea.hbm %s1, %s286
          %s288 = sshll.u32 %s277, 4
          %s289 = int_to_ptr.vmem [resolvable:$true] %s288
          %294 = dma.hbm_to_vmem [thread:$0]  %s287, 256, %s289, %s274, 128, 128, 8
        $region36: #{tpu_custom_call.1} parent=27 // pred_fallthru
          _
        // Predicated region
        $region37: #{tpu_custom_call.1} parent=27 // pred_check
          %p295 = pneg %p123
        $region38: #{tpu_custom_call.1} parent=27 // pred_check_branch
          %297 = sbr.rel (%p295) target = $region40
        $region39: #{tpu_custom_call.1} parent=27 // pred_region
          %s298 = sand.u32 %s21, 1
          %s299 = scalar_lea.sflag [#allocation7], %s298
          %s300 = sand.u32 %s113, 1
          %s301 = smul.addr %s300, 16
          %s302 = scalar_lea.vmem [#allocation8], %s301
          %s303 = sadd.s32 %s29, 1
          %p304 = scmp.lt.s32.totalorder %s303, 0
          %s305 = scalar_select %p304, %s303, 0
          %s307 = ssub.s32 256, 256
          %308 = vsyncadd %s299, %s307
          %s309 = smul.addr %s28, 2
          %s310 = sadd.s32 %s305, %s309
          %s311 = smul.addr %s310, 128
          %s312 = scalar_lea.hbm %s2, %s311
          %s313 = sshll.u32 %s302, 4
          %s314 = int_to_ptr.vmem [resolvable:$true] %s313
          %319 = dma.hbm_to_vmem [thread:$0]  %s312, 256, %s314, %s299, 128, 128, 8
        $region40: #{tpu_custom_call.1} parent=27 // pred_fallthru
          _
      $region28: #{tpu_custom_call.1} parent=5 // pred_fallthru
        _
      %p320 = scmp.le.s32.totalorder 1, %s21
      %p321 = scmp.lt.s32.totalorder %s21, 3
      %p322 = pnand %p320, %p321
      %p323 = pneg %p322
      // Predicated region
      $region41: #{tpu_custom_call.1} parent=5 // pred_check
        _
      $region42: #{tpu_custom_call.1} parent=5 // pred_check_branch
        %325 = sbr.rel (%p322) target = $region44
      $region43: #{tpu_custom_call.1} parent=5 // pred_region
        %s326 = ssub.s32 %s21, 1
        %s327 = sand.u32 %s48, 1
        %s328 = scalar_lea.sflag [#allocation4], %s327
        %s329 = sand.u32 %s48, 1
        %s330 = smul.addr %s329, 16
        %s331 = scalar_lea.vmem [#allocation3], %s330
        // Predicated region
        $region45: #{tpu_custom_call.1} parent=43 // pred_check
          %p332 = pneg %p61
        $region46: #{tpu_custom_call.1} parent=43 // pred_check_branch
          %334 = sbr.rel (%p332) target = $region48
        $region47: #{tpu_custom_call.1} parent=43 // pred_region
          %335 = dma.done %s328, 256
        $region48: #{tpu_custom_call.1} parent=43 // pred_fallthru
          _
        %s336 = sand.u32 %s26, 1
        %s337 = scalar_lea.sflag [#allocation7], %s336
        %s338 = sand.u32 %s82, 1
        %s339 = smul.addr %s338, 16
        %s340 = scalar_lea.vmem [#allocation6], %s339
        // Predicated region
        $region49: #{tpu_custom_call.1} parent=43 // pred_check
          %p341 = pneg %p95
        $region50: #{tpu_custom_call.1} parent=43 // pred_check_branch
          %343 = sbr.rel (%p341) target = $region52
        $region51: #{tpu_custom_call.1} parent=43 // pred_region
          %344 = dma.done %s337, 256
        $region52: #{tpu_custom_call.1} parent=43 // pred_fallthru
          _
        %s345 = sand.u32 %s26, 1
        %s346 = scalar_lea.sflag [#allocation7], %s345
        %s347 = sand.u32 %s116, 1
        %s348 = smul.addr %s347, 16
        %s349 = scalar_lea.vmem [#allocation8], %s348
        // Predicated region
        $region53: #{tpu_custom_call.1} parent=43 // pred_check
          %p350 = pneg %p129
        $region54: #{tpu_custom_call.1} parent=43 // pred_check_branch
          %352 = sbr.rel (%p350) target = $region56
        $region55: #{tpu_custom_call.1} parent=43 // pred_region
          %353 = dma.done %s346, 256
        $region56: #{tpu_custom_call.1} parent=43 // pred_fallthru
          _
        %s354 = sand.u32 %s48, 1
        %s355 = scalar_lea.sflag [#allocation4], %s354
        %s356 = sand.u32 %s48, 1
        %s357 = smul.addr %s356, 16
        %s358 = scalar_lea.vmem [#allocation3], %s357
        %p359 = pneg %p61
        %p360 = pneg %p58
        %s361 = sand.u32 %s26, 1
        %s362 = scalar_lea.sflag [#allocation7], %s361
        %s363 = sand.u32 %s82, 1
        %s364 = smul.addr %s363, 16
        %s365 = scalar_lea.vmem [#allocation6], %s364
        %p366 = pneg %p95
        %p367 = pneg %p92
        %s368 = sand.u32 %s26, 1
        %s369 = scalar_lea.sflag [#allocation7], %s368
        %s370 = sand.u32 %s116, 1
        %s371 = smul.addr %s370, 16
        %s372 = scalar_lea.vmem [#allocation8], %s371
        %p373 = pneg %p129
        %p374 = pneg %p126
        %p375 = pneg %p150
        %p376 = pneg %p147
        %p377 = pneg %p171
        %p378 = pneg %p168
        %p379 = pneg %p192
        %p380 = pneg %p189
        %p381 = pneg %p220
        %p382 = pneg %p217
        %s383 = sand.u32 %s207, 1
        %s384 = scalar_lea.sflag [#allocation5], %s383
        %s385 = sand.u32 %s207, 1
        %s386 = smul.addr %s385, 16
        %s387 = scalar_lea.vmem [#allocation9], %s386
        %s388 = ssub.s32 %s31, 1
        %p389 = scmp.gt.s32.totalorder %s388, 0
        %s390 = scalar_select %p389, %s388, 0
        %s391 = sadd.s32 %s31, 1
        %p392 = scmp.lt.s32.totalorder %s391, 0
        %s393 = scalar_select %p392, %s391, 0
        %s395 = smul.u32 %s31, 128
        %v396 = vld [vmem:[%s5] sm:$0xff]
        %v397 = vld [vmem:[%s5 + $0x8] sm:$0xff]
        %v398 = vld [vmem:[%s331] sm:$0xff]
        %v399 = vld [vmem:[%s331 + $0x8] sm:$0xff]
        %v400 = vlaneseq
        %v401 = vand.u32 %v400, 127
        %v402 = vstv %s395
        %v403 = vadd.s32 %v402, %v401
        %vm404 = vcmp.lt.s32.totalorder %v403, 64
        %v405 = vsel %vm404, 1, 0
        %vm406 = vcmp.eq.s32.totalorder %v405, 1
        %v407 = vsel %vm406, %v398, 0.0
        %v408 = vsel %vm406, %v399, 0.0
        %v409 = vld [vmem:[%s340] sm:$0xff]
        %v410 = vld [vmem:[%s340 + $0x8] sm:$0xff]
        %p411 = scmp.gt.s32.totalorder %s31, 0
        %s412 = scalar_select %p411, 1, 0
        %v413 = vstv %s412
        %vm414 = vcmp.eq.s32.totalorder %v413, 1
        %v415 = vsel %vm414, %v409, 0.0
        %v416 = vsel %vm414, %v410, 0.0
        %v417 = vld [vmem:[%s349] sm:$0xff]
        %v418 = vld [vmem:[%s349 + $0x8] sm:$0xff]
        %s419 = sadd.s32 %s395, 128
        %v420 = vstv %s419
        %v421 = vadd.s32 %v420, %v401
        %vm422 = vcmp.lt.s32.totalorder %v421, 64
        %v423 = vsel %vm422, 1, 0
        %vm424 = vcmp.eq.s32.totalorder %v423, 1
        %v425 = vsel %vm424, %v417, 0.0
        %v426 = vsel %vm424, %v418, 0.0
        %428 = vset.pattern.permute.xlu0 0
        %429 = vperm.xlu0 %428, %v396
        %v430 = vpop.permute.xlu0 %429
        %433 = vset.pattern.permute.xlu0 0
        %434 = vperm.xlu0 %433, %v397
        %v435 = vpop.permute.xlu0 %434
        %v437 = vmul.f32 %v430, %v407
        %v438 = vmul.f32 %v435, %v408
        %v439 = vand.u32 2147483647, %v437
        %vm440 = vcmp.le.f32.partialorder %v439, 0.7853982
        %vm441 = vcmp.lt.s32.totalorder %v437, 0
        %v442 = vand.u32 %v437, 2139095040
        %v443 = vshrl.u32 %v442, 23
        %v444 = vsub.s32 %v443, 127
        %v445 = vand.u32 2147483647, %v437
        %v446 = vand.u32 %v445, 8388607
        %v447 = vor.u32 %v446, 8388608
        %v448 = vsub.s32 0, %v447
        %v449 = vadd.s32 %v444, 1
        %vm450 = vcmp.gt.s32.totalorder %v449, 0
        %v451 = vsel %vm450, %v449, 0
        %v452 = vshrl.u32 %v451, 5
        %v453 = vand.u32 %v451, 31
        %v454 = vsub.s32 32, %v453
        %v455 = vshrl.u32 683565275, %v454
        %v456 = vshll.u32 683565275, %v453
        %v457 = vshrl.u32 2475754826, %v454
        %v458 = vor.u32 %v456, %v457
        %v459 = vshll.u32 2475754826, %v453
        %v460 = vshrl.u32 2131351028, %v454
        %v461 = vor.u32 %v459, %v460
        %v462 = vshll.u32 2131351028, %v453
        %v463 = vshrl.u32 2102212464, %v454
        %v464 = vor.u32 %v462, %v463
        %v465 = vshll.u32 2102212464, %v453
        %v466 = vshrl.u32 920167782, %v454
        %v467 = vor.u32 %v465, %v466
        %v468 = vshll.u32 920167782, %v453
        %v469 = vshrl.u32 1326507024, %v454
        %v470 = vor.u32 %v468, %v469
        %vm471 = vcmp.lt.s32.totalorder %v452, 1
        %vm472 = vcmp.lt.s32.totalorder %v452, 2
        %vm473 = vcmp.lt.s32.totalorder %v452, 3
        %vm474 = vcmp.lt.s32.totalorder %v452, 4
        %v475 = vsel %vm471, %v455, %v458
        %v476 = vsel %vm474, %v464, 2102212464
        %v477 = vsel %vm473, %v461, %v476
        %v478 = vsel %vm472, %v475, %v477
        %v479 = vsel %vm471, %v458, %v461
        %v480 = vsel %vm474, %v467, 920167782
        %v481 = vsel %vm473, %v464, %v480
        %v482 = vsel %vm472, %v479, %v481
        %v483 = vsel %vm471, %v461, %v464
        %v484 = vsel %vm474, %v470, 1326507024
        %v485 = vsel %vm473, %v467, %v484
        %v486 = vsel %vm472, %v483, %v485
        %v487 = vshll.u32 %v447, 8
        %v488 = vmul.u32.u64.compose %v487, %v486
        %v489 = vextract.low.u32 %v488
        %v490 = vextract.high.u32 %v488
        %v491 = vmul.u32.u64.compose %v487, %v482
        %v492 = vextract.low.u32 %v491
        %v493 = vextract.high.u32 %v491
        %v494 = vmul.u32 %v487, %v478
        %v495 = vadd.s32 %v490, %v492
        %vm496 = vc.u32 %v490, %v492
        %v497 = vadd.s32 %v493, 1
        %v498 = vsel %vm496, %v497, %v493
        %v499 = vadd.s32 %v494, %v498
        %v500 = vadd.s32 %v499, 536870912
        %v501 = vshrl.u32 %v500, 30
        %v502 = vshll.u32 %v501, 30
        %v503 = vsub.s32 %v499, %v502
        %vm504 = vcmp.lt.s32.totalorder %v503, 0
        %v505 = vsub.s32 0, %v503
        %v506 = vsel %vm504, %v505, %v503
        %v507 = vclz %v506
        %v508 = vsub.s32 %v507, 2
        %vm509 = vcmp.gt.s32.totalorder 0, %v508
        %v510 = vsel %vm509, 0, %v508
        %v511 = vsub.s32 32, %v510
        %v512 = vshll.u32 %v503, %v510
        %v513 = vshrl.u32 %v495, %v511
        %v514 = vor.u32 %v512, %v513
        %v515 = vsub.s32 4294967266, %v510
        %v516 = vadd.s32 %v515, 127
        %v517 = vshll.u32 %v516, 23
        %v518 = vor.u32 4788187, %v517
        %v519 = vand.u32 2147483647, %v518
        %v521 = vcvt.s32.f32 %v514
        %v522 = vmul.f32 %v521, %v519
        %v523 = vxor.u32 %v522, 2147483648
        %v524 = vsel %vm441, %v523, %v522
        %v525 = vsub.s32 4, %v501
        %v526 = vsel %vm441, %v525, %v501
        %v527 = vsel %vm440, %v437, %v524
        %v528 = vsel %vm440, 0, %v526
        %v529 = vcosq.f32.pop %v527
        %v530 = vsinq.f32.pop %v527
        %vm531 = vweird.f32 %v437
        %v532 = vadd.s32 %v528, 3
        %v533 = vand.u32 %v532, 3
        %vm534 = vcmp.lt.s32.totalorder %v533, 2
        %vm535 = vcmp.eq.s32.totalorder %v533, 0
        %v536 = vxor.u32 %v530, 2147483648
        %v537 = vsel %vm535, %v529, %v536
        %vm538 = vcmp.eq.s32.totalorder %v533, 2
        %v539 = vxor.u32 %v529, 2147483648
        %v540 = vsel %vm538, %v539, %v530
        %v541 = vsel %vm534, %v537, %v540
        %v542 = vsel %vm531, nan, %v541
        %v543 = vand.u32 2147483647, %v438
        %vm544 = vcmp.le.f32.partialorder %v543, 0.7853982
        %vm545 = vcmp.lt.s32.totalorder %v438, 0
        %v546 = vand.u32 %v438, 2139095040
        %v547 = vshrl.u32 %v546, 23
        %v548 = vsub.s32 %v547, 127
        %v549 = vand.u32 2147483647, %v438
        %v550 = vand.u32 %v549, 8388607
        %v551 = vor.u32 %v550, 8388608
        %v552 = vsub.s32 0, %v551
        %v553 = vadd.s32 %v548, 1
        %vm554 = vcmp.gt.s32.totalorder %v553, 0
        %v555 = vsel %vm554, %v553, 0
        %v556 = vshrl.u32 %v555, 5
        %v557 = vand.u32 %v555, 31
        %v558 = vsub.s32 32, %v557
        %v559 = vshrl.u32 683565275, %v558
        %v560 = vshll.u32 683565275, %v557
        %v561 = vshrl.u32 2475754826, %v558
        %v562 = vor.u32 %v560, %v561
        %v563 = vshll.u32 2475754826, %v557
        %v564 = vshrl.u32 2131351028, %v558
        %v565 = vor.u32 %v563, %v564
        %v566 = vshll.u32 2131351028, %v557
        %v567 = vshrl.u32 2102212464, %v558
        %v568 = vor.u32 %v566, %v567
        %v569 = vshll.u32 2102212464, %v557
        %v570 = vshrl.u32 920167782, %v558
        %v571 = vor.u32 %v569, %v570
        %v572 = vshll.u32 920167782, %v557
        %v573 = vshrl.u32 1326507024, %v558
        %v574 = vor.u32 %v572, %v573
        %vm575 = vcmp.lt.s32.totalorder %v556, 1
        %vm576 = vcmp.lt.s32.totalorder %v556, 2
        %vm577 = vcmp.lt.s32.totalorder %v556, 3
        %vm578 = vcmp.lt.s32.totalorder %v556, 4
        %v579 = vsel %vm575, %v559, %v562
        %v580 = vsel %vm578, %v568, 2102212464
        %v581 = vsel %vm577, %v565, %v580
        %v582 = vsel %vm576, %v579, %v581
        %v583 = vsel %vm575, %v562, %v565
        %v584 = vsel %vm578, %v571, 920167782
        %v585 = vsel %vm577, %v568, %v584
        %v586 = vsel %vm576, %v583, %v585
        %v587 = vsel %vm575, %v565, %v568
        %v588 = vsel %vm578, %v574, 1326507024
        %v589 = vsel %vm577, %v571, %v588
        %v590 = vsel %vm576, %v587, %v589
        %v591 = vshll.u32 %v551, 8
        %v592 = vmul.u32.u64.compose %v591, %v590
        %v593 = vextract.low.u32 %v592
        %v594 = vextract.high.u32 %v592
        %v595 = vmul.u32.u64.compose %v591, %v586
        %v596 = vextract.low.u32 %v595
        %v597 = vextract.high.u32 %v595
        %v598 = vmul.u32 %v591, %v582
        %v599 = vadd.s32 %v594, %v596
        %vm600 = vc.u32 %v594, %v596
        %v601 = vadd.s32 %v597, 1
        %v602 = vsel %vm600, %v601, %v597
        %v603 = vadd.s32 %v598, %v602
        %v604 = vadd.s32 %v603, 536870912
        %v605 = vshrl.u32 %v604, 30
        %v606 = vshll.u32 %v605, 30
        %v607 = vsub.s32 %v603, %v606
        %vm608 = vcmp.lt.s32.totalorder %v607, 0
        %v609 = vsub.s32 0, %v607
        %v610 = vsel %vm608, %v609, %v607
        %v611 = vclz %v610
        %v612 = vsub.s32 %v611, 2
        %vm613 = vcmp.gt.s32.totalorder 0, %v612
        %v614 = vsel %vm613, 0, %v612
        %v615 = vsub.s32 32, %v614
        %v616 = vshll.u32 %v607, %v614
        %v617 = vshrl.u32 %v599, %v615
        %v618 = vor.u32 %v616, %v617
        %v619 = vsub.s32 4294967266, %v614
        %v620 = vadd.s32 %v619, 127
        %v621 = vshll.u32 %v620, 23
        %v622 = vor.u32 4788187, %v621
        %v623 = vand.u32 2147483647, %v622
        %v625 = vcvt.s32.f32 %v618
        %v626 = vmul.f32 %v625, %v623
        %v627 = vxor.u32 %v626, 2147483648
        %v628 = vsel %vm545, %v627, %v626
        %v629 = vsub.s32 4, %v605
        %v630 = vsel %vm545, %v629, %v605
        %v631 = vsel %vm544, %v438, %v628
        %v632 = vsel %vm544, 0, %v630
        %v633 = vcosq.f32.pop %v631
        %v634 = vsinq.f32.pop %v631
        %vm635 = vweird.f32 %v438
        %v636 = vadd.s32 %v632, 3
        %v637 = vand.u32 %v636, 3
        %vm638 = vcmp.lt.s32.totalorder %v637, 2
        %vm639 = vcmp.eq.s32.totalorder %v637, 0
        %v640 = vxor.u32 %v634, 2147483648
        %v641 = vsel %vm639, %v633, %v640
        %vm642 = vcmp.eq.s32.totalorder %v637, 2
        %v643 = vxor.u32 %v633, 2147483648
        %v644 = vsel %vm642, %v643, %v634
        %v645 = vsel %vm638, %v641, %v644
        %v646 = vsel %vm635, nan, %v645
        %v647 = vmul.f32 %v542, %v542
        %v648 = vmul.f32 %v646, %v646
        %649 = vset.pattern.permute.xlu0 1
        %650 = vperm.xlu0 %649, %v396
        %v651 = vpop.permute.xlu0 %650
        %653 = vset.pattern.permute.xlu0 1
        %654 = vperm.xlu0 %653, %v397
        %v655 = vpop.permute.xlu0 %654
        %v657 = vmul.f32 %v651, %v647
        %v658 = vmul.f32 %v655, %v648
        %v659 = vadd.f32 %v407, %v657
        %v660 = vadd.f32 %v408, %v658
        %v661 = vmul.f32 %v430, %v415
        %v662 = vmul.f32 %v435, %v416
        %v663 = vand.u32 2147483647, %v661
        %vm664 = vcmp.le.f32.partialorder %v663, 0.7853982
        %vm665 = vcmp.lt.s32.totalorder %v661, 0
        %v666 = vand.u32 %v661, 2139095040
        %v667 = vshrl.u32 %v666, 23
        %v668 = vsub.s32 %v667, 127
        %v669 = vand.u32 2147483647, %v661
        %v670 = vand.u32 %v669, 8388607
        %v671 = vor.u32 %v670, 8388608
        %v672 = vsub.s32 0, %v671
        %v673 = vadd.s32 %v668, 1
        %vm674 = vcmp.gt.s32.totalorder %v673, 0
        %v675 = vsel %vm674, %v673, 0
        %v676 = vshrl.u32 %v675, 5
        %v677 = vand.u32 %v675, 31
        %v678 = vsub.s32 32, %v677
        %v679 = vshrl.u32 683565275, %v678
        %v680 = vshll.u32 683565275, %v677
        %v681 = vshrl.u32 2475754826, %v678
        %v682 = vor.u32 %v680, %v681
        %v683 = vshll.u32 2475754826, %v677
        %v684 = vshrl.u32 2131351028, %v678
        %v685 = vor.u32 %v683, %v684
        %v686 = vshll.u32 2131351028, %v677
        %v687 = vshrl.u32 2102212464, %v678
        %v688 = vor.u32 %v686, %v687
        %v689 = vshll.u32 2102212464, %v677
        %v690 = vshrl.u32 920167782, %v678
        %v691 = vor.u32 %v689, %v690
        %v692 = vshll.u32 920167782, %v677
        %v693 = vshrl.u32 1326507024, %v678
        %v694 = vor.u32 %v692, %v693
        %vm695 = vcmp.lt.s32.totalorder %v676, 1
        %vm696 = vcmp.lt.s32.totalorder %v676, 2
        %vm697 = vcmp.lt.s32.totalorder %v676, 3
        %vm698 = vcmp.lt.s32.totalorder %v676, 4
        %v699 = vsel %vm695, %v679, %v682
        %v700 = vsel %vm698, %v688, 2102212464
        %v701 = vsel %vm697, %v685, %v700
        %v702 = vsel %vm696, %v699, %v701
        %v703 = vsel %vm695, %v682, %v685
        %v704 = vsel %vm698, %v691, 920167782
        %v705 = vsel %vm697, %v688, %v704
        %v706 = vsel %vm696, %v703, %v705
        %v707 = vsel %vm695, %v685, %v688
        %v708 = vsel %vm698, %v694, 1326507024
        %v709 = vsel %vm697, %v691, %v708
        %v710 = vsel %vm696, %v707, %v709
        %v711 = vshll.u32 %v671, 8
        %v712 = vmul.u32.u64.compose %v711, %v710
        %v713 = vextract.low.u32 %v712
        %v714 = vextract.high.u32 %v712
        %v715 = vmul.u32.u64.compose %v711, %v706
        %v716 = vextract.low.u32 %v715
        %v717 = vextract.high.u32 %v715
        %v718 = vmul.u32 %v711, %v702
        %v719 = vadd.s32 %v714, %v716
        %vm720 = vc.u32 %v714, %v716
        %v721 = vadd.s32 %v717, 1
        %v722 = vsel %vm720, %v721, %v717
        %v723 = vadd.s32 %v718, %v722
        %v724 = vadd.s32 %v723, 536870912
        %v725 = vshrl.u32 %v724, 30
        %v726 = vshll.u32 %v725, 30
        %v727 = vsub.s32 %v723, %v726
        %vm728 = vcmp.lt.s32.totalorder %v727, 0
        %v729 = vsub.s32 0, %v727
        %v730 = vsel %vm728, %v729, %v727
        %v731 = vclz %v730
        %v732 = vsub.s32 %v731, 2
        %vm733 = vcmp.gt.s32.totalorder 0, %v732
        %v734 = vsel %vm733, 0, %v732
        %v735 = vsub.s32 32, %v734
        %v736 = vshll.u32 %v727, %v734
        %v737 = vshrl.u32 %v719, %v735
        %v738 = vor.u32 %v736, %v737
        %v739 = vsub.s32 4294967266, %v734
        %v740 = vadd.s32 %v739, 127
        %v741 = vshll.u32 %v740, 23
        %v742 = vor.u32 4788187, %v741
        %v743 = vand.u32 2147483647, %v742
        %v745 = vcvt.s32.f32 %v738
        %v746 = vmul.f32 %v745, %v743
        %v747 = vxor.u32 %v746, 2147483648
        %v748 = vsel %vm665, %v747, %v746
        %v749 = vsub.s32 4, %v725
        %v750 = vsel %vm665, %v749, %v725
        %v751 = vsel %vm664, %v661, %v748
        %v752 = vsel %vm664, 0, %v750
        %v753 = vcosq.f32.pop %v751
        %v754 = vsinq.f32.pop %v751
        %vm755 = vweird.f32 %v661
        %v756 = vadd.s32 %v752, 3
        %v757 = vand.u32 %v756, 3
        %vm758 = vcmp.lt.s32.totalorder %v757, 2
        %vm759 = vcmp.eq.s32.totalorder %v757, 0
        %v760 = vxor.u32 %v754, 2147483648
        %v761 = vsel %vm759, %v753, %v760
        %vm762 = vcmp.eq.s32.totalorder %v757, 2
        %v763 = vxor.u32 %v753, 2147483648
        %v764 = vsel %vm762, %v763, %v754
        %v765 = vsel %vm758, %v761, %v764
        %v766 = vsel %vm755, nan, %v765
        %v767 = vand.u32 2147483647, %v662
        %vm768 = vcmp.le.f32.partialorder %v767, 0.7853982
        %vm769 = vcmp.lt.s32.totalorder %v662, 0
        %v770 = vand.u32 %v662, 2139095040
        %v771 = vshrl.u32 %v770, 23
        %v772 = vsub.s32 %v771, 127
        %v773 = vand.u32 2147483647, %v662
        %v774 = vand.u32 %v773, 8388607
        %v775 = vor.u32 %v774, 8388608
        %v776 = vsub.s32 0, %v775
        %v777 = vadd.s32 %v772, 1
        %vm778 = vcmp.gt.s32.totalorder %v777, 0
        %v779 = vsel %vm778, %v777, 0
        %v780 = vshrl.u32 %v779, 5
        %v781 = vand.u32 %v779, 31
        %v782 = vsub.s32 32, %v781
        %v783 = vshrl.u32 683565275, %v782
        %v784 = vshll.u32 683565275, %v781
        %v785 = vshrl.u32 2475754826, %v782
        %v786 = vor.u32 %v784, %v785
        %v787 = vshll.u32 2475754826, %v781
        %v788 = vshrl.u32 2131351028, %v782
        %v789 = vor.u32 %v787, %v788
        %v790 = vshll.u32 2131351028, %v781
        %v791 = vshrl.u32 2102212464, %v782
        %v792 = vor.u32 %v790, %v791
        %v793 = vshll.u32 2102212464, %v781
        %v794 = vshrl.u32 920167782, %v782
        %v795 = vor.u32 %v793, %v794
        %v796 = vshll.u32 920167782, %v781
        %v797 = vshrl.u32 1326507024, %v782
        %v798 = vor.u32 %v796, %v797
        %vm799 = vcmp.lt.s32.totalorder %v780, 1
        %vm800 = vcmp.lt.s32.totalorder %v780, 2
        %vm801 = vcmp.lt.s32.totalorder %v780, 3
        %vm802 = vcmp.lt.s32.totalorder %v780, 4
        %v803 = vsel %vm799, %v783, %v786
        %v804 = vsel %vm802, %v792, 2102212464
        %v805 = vsel %vm801, %v789, %v804
        %v806 = vsel %vm800, %v803, %v805
        %v807 = vsel %vm799, %v786, %v789
        %v808 = vsel %vm802, %v795, 920167782
        %v809 = vsel %vm801, %v792, %v808
        %v810 = vsel %vm800, %v807, %v809
        %v811 = vsel %vm799, %v789, %v792
        %v812 = vsel %vm802, %v798, 1326507024
        %v813 = vsel %vm801, %v795, %v812
        %v814 = vsel %vm800, %v811, %v813
        %v815 = vshll.u32 %v775, 8
        %v816 = vmul.u32.u64.compose %v815, %v814
        %v817 = vextract.low.u32 %v816
        %v818 = vextract.high.u32 %v816
        %v819 = vmul.u32.u64.compose %v815, %v810
        %v820 = vextract.low.u32 %v819
        %v821 = vextract.high.u32 %v819
        %v822 = vmul.u32 %v815, %v806
        %v823 = vadd.s32 %v818, %v820
        %vm824 = vc.u32 %v818, %v820
        %v825 = vadd.s32 %v821, 1
        %v826 = vsel %vm824, %v825, %v821
        %v827 = vadd.s32 %v822, %v826
        %v828 = vadd.s32 %v827, 536870912
        %v829 = vshrl.u32 %v828, 30
        %v830 = vshll.u32 %v829, 30
        %v831 = vsub.s32 %v827, %v830
        %vm832 = vcmp.lt.s32.totalorder %v831, 0
        %v833 = vsub.s32 0, %v831
        %v834 = vsel %vm832, %v833, %v831
        %v835 = vclz %v834
        %v836 = vsub.s32 %v835, 2
        %vm837 = vcmp.gt.s32.totalorder 0, %v836
        %v838 = vsel %vm837, 0, %v836
        %v839 = vsub.s32 32, %v838
        %v840 = vshll.u32 %v831, %v838
        %v841 = vshrl.u32 %v823, %v839
        %v842 = vor.u32 %v840, %v841
        %v843 = vsub.s32 4294967266, %v838
        %v844 = vadd.s32 %v843, 127
        %v845 = vshll.u32 %v844, 23
        %v846 = vor.u32 4788187, %v845
        %v847 = vand.u32 2147483647, %v846
        %v849 = vcvt.s32.f32 %v842
        %v850 = vmul.f32 %v849, %v847
        %v851 = vxor.u32 %v850, 2147483648
        %v852 = vsel %vm769, %v851, %v850
        %v853 = vsub.s32 4, %v829
        %v854 = vsel %vm769, %v853, %v829
        %v855 = vsel %vm768, %v662, %v852
        %v856 = vsel %vm768, 0, %v854
        %v857 = vcosq.f32.pop %v855
        %v858 = vsinq.f32.pop %v855
        %vm859 = vweird.f32 %v662
        %v860 = vadd.s32 %v856, 3
        %v861 = vand.u32 %v860, 3
        %vm862 = vcmp.lt.s32.totalorder %v861, 2
        %vm863 = vcmp.eq.s32.totalorder %v861, 0
        %v864 = vxor.u32 %v858, 2147483648
        %v865 = vsel %vm863, %v857, %v864
        %vm866 = vcmp.eq.s32.totalorder %v861, 2
        %v867 = vxor.u32 %v857, 2147483648
        %v868 = vsel %vm866, %v867, %v858
        %v869 = vsel %vm862, %v865, %v868
        %v870 = vsel %vm859, nan, %v869
        %v871 = vmul.f32 %v766, %v766
        %v872 = vmul.f32 %v870, %v870
        %v873 = vmul.f32 %v651, %v871
        %v874 = vmul.f32 %v655, %v872
        %v875 = vadd.f32 %v415, %v873
        %v876 = vadd.f32 %v416, %v874
        %v877 = vmul.f32 %v430, %v425
        %v878 = vmul.f32 %v435, %v426
        %v879 = vand.u32 2147483647, %v877
        %vm880 = vcmp.le.f32.partialorder %v879, 0.7853982
        %vm881 = vcmp.lt.s32.totalorder %v877, 0
        %v882 = vand.u32 %v877, 2139095040
        %v883 = vshrl.u32 %v882, 23
        %v884 = vsub.s32 %v883, 127
        %v885 = vand.u32 2147483647, %v877
        %v886 = vand.u32 %v885, 8388607
        %v887 = vor.u32 %v886, 8388608
        %v888 = vsub.s32 0, %v887
        %v889 = vadd.s32 %v884, 1
        %vm890 = vcmp.gt.s32.totalorder %v889, 0
        %v891 = vsel %vm890, %v889, 0
        %v892 = vshrl.u32 %v891, 5
        %v893 = vand.u32 %v891, 31
        %v894 = vsub.s32 32, %v893
        %v895 = vshrl.u32 683565275, %v894
        %v896 = vshll.u32 683565275, %v893
        %v897 = vshrl.u32 2475754826, %v894
        %v898 = vor.u32 %v896, %v897
        %v899 = vshll.u32 2475754826, %v893
        %v900 = vshrl.u32 2131351028, %v894
        %v901 = vor.u32 %v899, %v900
        %v902 = vshll.u32 2131351028, %v893
        %v903 = vshrl.u32 2102212464, %v894
        %v904 = vor.u32 %v902, %v903
        %v905 = vshll.u32 2102212464, %v893
        %v906 = vshrl.u32 920167782, %v894
        %v907 = vor.u32 %v905, %v906
        %v908 = vshll.u32 920167782, %v893
        %v909 = vshrl.u32 1326507024, %v894
        %v910 = vor.u32 %v908, %v909
        %vm911 = vcmp.lt.s32.totalorder %v892, 1
        %vm912 = vcmp.lt.s32.totalorder %v892, 2
        %vm913 = vcmp.lt.s32.totalorder %v892, 3
        %vm914 = vcmp.lt.s32.totalorder %v892, 4
        %v915 = vsel %vm911, %v895, %v898
        %v916 = vsel %vm914, %v904, 2102212464
        %v917 = vsel %vm913, %v901, %v916
        %v918 = vsel %vm912, %v915, %v917
        %v919 = vsel %vm911, %v898, %v901
        %v920 = vsel %vm914, %v907, 920167782
        %v921 = vsel %vm913, %v904, %v920
        %v922 = vsel %vm912, %v919, %v921
        %v923 = vsel %vm911, %v901, %v904
        %v924 = vsel %vm914, %v910, 1326507024
        %v925 = vsel %vm913, %v907, %v924
        %v926 = vsel %vm912, %v923, %v925
        %v927 = vshll.u32 %v887, 8
        %v928 = vmul.u32.u64.compose %v927, %v926
        %v929 = vextract.low.u32 %v928
        %v930 = vextract.high.u32 %v928
        %v931 = vmul.u32.u64.compose %v927, %v922
        %v932 = vextract.low.u32 %v931
        %v933 = vextract.high.u32 %v931
        %v934 = vmul.u32 %v927, %v918
        %v935 = vadd.s32 %v930, %v932
        %vm936 = vc.u32 %v930, %v932
        %v937 = vadd.s32 %v933, 1
        %v938 = vsel %vm936, %v937, %v933
        %v939 = vadd.s32 %v934, %v938
        %v940 = vadd.s32 %v939, 536870912
        %v941 = vshrl.u32 %v940, 30
        %v942 = vshll.u32 %v941, 30
        %v943 = vsub.s32 %v939, %v942
        %vm944 = vcmp.lt.s32.totalorder %v943, 0
        %v945 = vsub.s32 0, %v943
        %v946 = vsel %vm944, %v945, %v943
        %v947 = vclz %v946
        %v948 = vsub.s32 %v947, 2
        %vm949 = vcmp.gt.s32.totalorder 0, %v948
        %v950 = vsel %vm949, 0, %v948
        %v951 = vsub.s32 32, %v950
        %v952 = vshll.u32 %v943, %v950
        %v953 = vshrl.u32 %v935, %v951
        %v954 = vor.u32 %v952, %v953
        %v955 = vsub.s32 4294967266, %v950
        %v956 = vadd.s32 %v955, 127
        %v957 = vshll.u32 %v956, 23
        %v958 = vor.u32 4788187, %v957
        %v959 = vand.u32 2147483647, %v958
        %v961 = vcvt.s32.f32 %v954
        %v962 = vmul.f32 %v961, %v959
        %v963 = vxor.u32 %v962, 2147483648
        %v964 = vsel %vm881, %v963, %v962
        %v965 = vsub.s32 4, %v941
        %v966 = vsel %vm881, %v965, %v941
        %v967 = vsel %vm880, %v877, %v964
        %v968 = vsel %vm880, 0, %v966
        %v969 = vcosq.f32.pop %v967
        %v970 = vsinq.f32.pop %v967
        %vm971 = vweird.f32 %v877
        %v972 = vadd.s32 %v968, 3
        %v973 = vand.u32 %v972, 3
        %vm974 = vcmp.lt.s32.totalorder %v973, 2
        %vm975 = vcmp.eq.s32.totalorder %v973, 0
        %v976 = vxor.u32 %v970, 2147483648
        %v977 = vsel %vm975, %v969, %v976
        %vm978 = vcmp.eq.s32.totalorder %v973, 2
        %v979 = vxor.u32 %v969, 2147483648
        %v980 = vsel %vm978, %v979, %v970
        %v981 = vsel %vm974, %v977, %v980
        %v982 = vsel %vm971, nan, %v981
        %v983 = vand.u32 2147483647, %v878
        %vm984 = vcmp.le.f32.partialorder %v983, 0.7853982
        %vm985 = vcmp.lt.s32.totalorder %v878, 0
        %v986 = vand.u32 %v878, 2139095040
        %v987 = vshrl.u32 %v986, 23
        %v988 = vsub.s32 %v987, 127
        %v989 = vand.u32 2147483647, %v878
        %v990 = vand.u32 %v989, 8388607
        %v991 = vor.u32 %v990, 8388608
        %v992 = vsub.s32 0, %v991
        %v993 = vadd.s32 %v988, 1
        %vm994 = vcmp.gt.s32.totalorder %v993, 0
        %v995 = vsel %vm994, %v993, 0
        %v996 = vshrl.u32 %v995, 5
        %v997 = vand.u32 %v995, 31
        %v998 = vsub.s32 32, %v997
        %v999 = vshrl.u32 683565275, %v998
        %v1000 = vshll.u32 683565275, %v997
        %v1001 = vshrl.u32 2475754826, %v998
        %v1002 = vor.u32 %v1000, %v1001
        %v1003 = vshll.u32 2475754826, %v997
        %v1004 = vshrl.u32 2131351028, %v998
        %v1005 = vor.u32 %v1003, %v1004
        %v1006 = vshll.u32 2131351028, %v997
        %v1007 = vshrl.u32 2102212464, %v998
        %v1008 = vor.u32 %v1006, %v1007
        %v1009 = vshll.u32 2102212464, %v997
        %v1010 = vshrl.u32 920167782, %v998
        %v1011 = vor.u32 %v1009, %v1010
        %v1012 = vshll.u32 920167782, %v997
        %v1013 = vshrl.u32 1326507024, %v998
        %v1014 = vor.u32 %v1012, %v1013
        %vm1015 = vcmp.lt.s32.totalorder %v996, 1
        %vm1016 = vcmp.lt.s32.totalorder %v996, 2
        %vm1017 = vcmp.lt.s32.totalorder %v996, 3
        %vm1018 = vcmp.lt.s32.totalorder %v996, 4
        %v1019 = vsel %vm1015, %v999, %v1002
        %v1020 = vsel %vm1018, %v1008, 2102212464
        %v1021 = vsel %vm1017, %v1005, %v1020
        %v1022 = vsel %vm1016, %v1019, %v1021
        %v1023 = vsel %vm1015, %v1002, %v1005
        %v1024 = vsel %vm1018, %v1011, 920167782
        %v1025 = vsel %vm1017, %v1008, %v1024
        %v1026 = vsel %vm1016, %v1023, %v1025
        %v1027 = vsel %vm1015, %v1005, %v1008
        %v1028 = vsel %vm1018, %v1014, 1326507024
        %v1029 = vsel %vm1017, %v1011, %v1028
        %v1030 = vsel %vm1016, %v1027, %v1029
        %v1031 = vshll.u32 %v991, 8
        %v1032 = vmul.u32.u64.compose %v1031, %v1030
        %v1033 = vextract.low.u32 %v1032
        %v1034 = vextract.high.u32 %v1032
        %v1035 = vmul.u32.u64.compose %v1031, %v1026
        %v1036 = vextract.low.u32 %v1035
        %v1037 = vextract.high.u32 %v1035
        %v1038 = vmul.u32 %v1031, %v1022
        %v1039 = vadd.s32 %v1034, %v1036
        %vm1040 = vc.u32 %v1034, %v1036
        %v1041 = vadd.s32 %v1037, 1
        %v1042 = vsel %vm1040, %v1041, %v1037
        %v1043 = vadd.s32 %v1038, %v1042
        %v1044 = vadd.s32 %v1043, 536870912
        %v1045 = vshrl.u32 %v1044, 30
        %v1046 = vshll.u32 %v1045, 30
        %v1047 = vsub.s32 %v1043, %v1046
        %vm1048 = vcmp.lt.s32.totalorder %v1047, 0
        %v1049 = vsub.s32 0, %v1047
        %v1050 = vsel %vm1048, %v1049, %v1047
        %v1051 = vclz %v1050
        %v1052 = vsub.s32 %v1051, 2
        %vm1053 = vcmp.gt.s32.totalorder 0, %v1052
        %v1054 = vsel %vm1053, 0, %v1052
        %v1055 = vsub.s32 32, %v1054
        %v1056 = vshll.u32 %v1047, %v1054
        %v1057 = vshrl.u32 %v1039, %v1055
        %v1058 = vor.u32 %v1056, %v1057
        %v1059 = vsub.s32 4294967266, %v1054
        %v1060 = vadd.s32 %v1059, 127
        %v1061 = vshll.u32 %v1060, 23
        %v1062 = vor.u32 4788187, %v1061
        %v1063 = vand.u32 2147483647, %v1062
        %v1065 = vcvt.s32.f32 %v1058
        %v1066 = vmul.f32 %v1065, %v1063
        %v1067 = vxor.u32 %v1066, 2147483648
        %v1068 = vsel %vm985, %v1067, %v1066
        %v1069 = vsub.s32 4, %v1045
        %v1070 = vsel %vm985, %v1069, %v1045
        %v1071 = vsel %vm984, %v878, %v1068
        %v1072 = vsel %vm984, 0, %v1070
        %v1073 = vcosq.f32.pop %v1071
        %v1074 = vsinq.f32.pop %v1071
        %vm1075 = vweird.f32 %v878
        %v1076 = vadd.s32 %v1072, 3
        %v1077 = vand.u32 %v1076, 3
        %vm1078 = vcmp.lt.s32.totalorder %v1077, 2
        %vm1079 = vcmp.eq.s32.totalorder %v1077, 0
        %v1080 = vxor.u32 %v1074, 2147483648
        %v1081 = vsel %vm1079, %v1073, %v1080
        %vm1082 = vcmp.eq.s32.totalorder %v1077, 2
        %v1083 = vxor.u32 %v1073, 2147483648
        %v1084 = vsel %vm1082, %v1083, %v1074
        %v1085 = vsel %vm1078, %v1081, %v1084
        %v1086 = vsel %vm1075, nan, %v1085
        %v1087 = vmul.f32 %v982, %v982
        %v1088 = vmul.f32 %v1086, %v1086
        %v1089 = vmul.f32 %v651, %v1087
        %v1090 = vmul.f32 %v655, %v1088
        %v1091 = vadd.f32 %v425, %v1089
        %v1092 = vadd.f32 %v426, %v1090
        %v1093 = vpack.c.bf16 %v660, %v659
        %v1095 = vunpack.c.l.b16 %v1093
        %v1096 = vunpack.c.h.b16 %v1093
        %v1097 = vpack.c.b16 %v1095, %v1095
        %v1098 = vpack.c.b16 %v1096, %v1096
        %1101 = vst [vmem:[#allocation2 + $0x4] sm:$0xf] %v1097
        %1102 = vst [vmem:[#allocation2 + $0x10] sm:$0xf] %v1098
        %v1103 = vpack.c.bf16 %v876, %v875
        %v1105 = vunpack.c.l.b16 %v1103
        %v1106 = vunpack.c.h.b16 %v1103
        %v1107 = vpack.c.b16 %v1105, %v1105
        %v1108 = vpack.c.b16 %v1106, %v1106
        %vm1111 = vcmask 1044456
        %1112 = vst.msk [vmem:[#allocation2] sm:$0xf] %vm1111, %v1107
        %1113 = vst.msk [vmem:[#allocation2 + $0xc] sm:$0xf] %vm1111, %v1108
        %v1114 = vpack.c.bf16 %v1092, %v1091
        %v1116 = vunpack.c.l.b16 %v1114
        %v1117 = vunpack.c.h.b16 %v1114
        %v1118 = vpack.c.b16 %v1116, %v1116
        %v1119 = vpack.c.b16 %v1117, %v1117
        %vm1122 = vcmask 19456
        %1123 = vst.msk [vmem:[#allocation2 + $0x8] sm:$0xf] %vm1122, %v1118
        %1124 = vst.msk [vmem:[#allocation2 + $0x14] sm:$0xf] %vm1122, %v1119
        %v1125 = vld [vmem:[#allocation2] sm:$0xff]
        %v1126 = vld [vmem:[#allocation2 + $0xc] sm:$0xff]
        %v1127 = vld [vmem:[#allocation2 + $0x4] sm:$0xf]
        %v1128 = vld [vmem:[#allocation2 + $0x10] sm:$0xf]
        %v1129 = vld [vmem:[#allocation2 + $0x4] sm:$0xff]
        %v1130 = vld [vmem:[#allocation2 + $0x10] sm:$0xff]
        %v1133 = vunpack.c.l.b16 %v1125
        %v1134 = vunpack.c.h.b16 %v1125
        %v1135 = vunpack.c.l.b16 %v1126
        %v1136 = vunpack.c.h.b16 %v1126
        %v1137 = vpack.c.b16 %v1135, %v1133
        %v1138 = vpack.c.b16 %v1136, %v1134
        %1139 = vrot.lane.b32.xlu0 %v1137, 127
        %v1140 = vpop.permute.xlu0 %1139
        %1141 = vrot.lane.b32.xlu0 %v1138, 127
        %v1142 = vpop.permute.xlu0 %1141
        %vm1143 = vcmask 1039360
        %v1144 = vsel %vm1143, %v1140, %v1142
        %1145 = vrot.lane.b32.xlu0 %v1137, 126
        %v1146 = vpop.permute.xlu0 %1145
        %1147 = vrot.lane.b32.xlu0 %v1138, 126
        %v1148 = vpop.permute.xlu0 %1147
        %vm1149 = vcmask 1031168
        %v1150 = vsel %vm1149, %v1146, %v1148
        %v1153 = vunpack.c.l.b16 %v1127
        %v1154 = vunpack.c.l.b16 %v1128
        %v1155 = vpack.c.b16 %v1154, %v1153
        %1156 = vrot.lane.b32.xlu0 %v1155, 125
        %v1157 = vpop.permute.xlu0 %1156
        %v1160 = vunpack.c.l.b16 %v1129
        %v1161 = vunpack.c.h.b16 %v1129
        %v1162 = vunpack.c.l.b16 %v1130
        %v1163 = vunpack.c.h.b16 %v1130
        %v1164 = vpack.c.b16 %v1162, %v1160
        %v1165 = vpack.c.b16 %v1163, %v1161
        %1166 = vrot.lane.b32.xlu0 %v1164, 124
        %v1167 = vpop.permute.xlu0 %1166
        %1168 = vrot.lane.b32.xlu0 %v1165, 124
        %v1169 = vpop.permute.xlu0 %1168
        %vm1170 = vcmask 1014784
        %v1171 = vsel %vm1170, %v1167, %v1169
        %1172 = vrot.lane.b32.xlu0 %v1164, 123
        %v1173 = vpop.permute.xlu0 %1172
        %1174 = vrot.lane.b32.xlu0 %v1165, 123
        %v1175 = vpop.permute.xlu0 %1174
        %vm1176 = vcmask 1006592
        %v1177 = vsel %vm1176, %v1173, %v1175
        %1178 = vrot.lane.b32.xlu0 %v1164, 122
        %v1179 = vpop.permute.xlu0 %1178
        %1180 = vrot.lane.b32.xlu0 %v1165, 122
        %v1181 = vpop.permute.xlu0 %1180
        %vm1182 = vcmask 998400
        %v1183 = vsel %vm1182, %v1179, %v1181
        %v1184 = vld [vmem:[%s3] sm:$0xf]
        %v1185 = vld [vmem:[%s3 + $0x4] sm:$0xf]
        %1186 = vset.pattern.permute.xlu0 2
        %1187 = vperm.xlu0 %1186, %v396
        %v1188 = vpop.permute.xlu0 %1187
        %1190 = vset.pattern.permute.xlu0 2
        %1191 = vperm.xlu0 %1190, %v397
        %v1192 = vpop.permute.xlu0 %1191
        %v1196 = vunpack.c.l.b16 %v1184
        %v1197 = vunpack.c.l.b16 %v1185
        %v1198 = vpack.c.b16 %v1197, %v1196
        %1199 = vrot.lane.b32.xlu0 %v1137, 3
        %v1200 = vpop.permute.xlu0 %1199
        %1201 = vrot.lane.b32.xlu0 %v1138, 3
        %v1202 = vpop.permute.xlu0 %1201
        %1203 = vrot.lane.b32.xlu0 %v1144, 3
        %v1204 = vpop.permute.xlu0 %1203
        %1205 = vrot.lane.b32.xlu0 %v1142, 3
        %v1206 = vpop.permute.xlu0 %1205
        %1207 = vrot.lane.b32.xlu0 %v1150, 3
        %v1208 = vpop.permute.xlu0 %1207
        %1209 = vrot.lane.b32.xlu0 %v1148, 3
        %v1210 = vpop.permute.xlu0 %1209
        %1211 = vrot.lane.b32.xlu0 %v1157, 3
        %v1212 = vpop.permute.xlu0 %1211
        %1213 = vrot.lane.b32.xlu0 %v1167, 3
        %v1214 = vpop.permute.xlu0 %1213
        %1215 = vrot.lane.b32.xlu0 %v1171, 3
        %v1216 = vpop.permute.xlu0 %1215
        %1217 = vrot.lane.b32.xlu0 %v1173, 3
        %v1218 = vpop.permute.xlu0 %1217
        %1219 = vrot.lane.b32.xlu0 %v1177, 3
        %v1220 = vpop.permute.xlu0 %1219
        %1221 = vrot.lane.b32.xlu0 %v1179, 3
        %v1222 = vpop.permute.xlu0 %1221
        %1223 = vrot.lane.b32.xlu0 %v1183, 3
        %v1224 = vpop.permute.xlu0 %1223
        %vm1225 = vcmask 23552
        %v1226 = vsel %vm1225, %v1200, %v1202
        %v1227 = vsel %vm1225, %v1204, %v1206
        %v1228 = vsel %vm1225, %v1208, %v1210
        %v1229 = vsel %vm1225, %v1214, %v1216
        %v1230 = vsel %vm1225, %v1218, %v1220
        %v1231 = vsel %vm1225, %v1222, %v1224
        %vm1239 = vcmask 916480
        %v1241 = vsel %vm1239, %v1198, 0
        %1243 = vmatprep.subr.bf16.mxu0 0
        %1244 = vmatpush1.bf16.msra.mxu0 0
        %1245 = vmatprep.subr.bf16.mxu0 0
        %1246 = vmatpush1.bf16.msra.mxu0 %v1231
        %1247 = vmatprep.subr.bf16.mxu0 0
        %1248 = vmatpush1.bf16.msra.mxu0 %v1230
        %1249 = vmatprep.subr.bf16.mxu0 0
        %1250 = vmatpush1.bf16.msra.mxu0 %v1229
        %1251 = vmatprep.subr.bf16.mxu0 0
        %1252 = vmatpush1.bf16.msra.mxu0 %v1212
        %1253 = vmatprep.subr.bf16.mxu0 0
        %1254 = vmatpush1.bf16.msra.mxu0 %v1228
        %1255 = vmatprep.subr.bf16.mxu0 0
        %1256 = vmatpush1.bf16.msra.mxu0 %v1227
        %1257 = vmatprep.subr.bf16.mxu0 0
        %1258 = vmatpush1.bf16.msra.mxu0 %v1226
        %1259 = vmatprep.subr.bf16.mxu0 0
        %1260 = vmatpush2.bf16.msra.mxu0 0
        %1261 = vmatprep.subr.bf16.mxu0 0
        %1262 = vmatpush2.bf16.msra.mxu0 0
        %1263 = vmatprep.subr.bf16.mxu0 0
        %1264 = vmatpush2.bf16.msra.mxu0 0
        %1265 = vmatprep.subr.bf16.mxu0 0
        %1266 = vmatpush2.bf16.msra.mxu0 0
        %1267 = vmatprep.subr.bf16.mxu0 0
        %1268 = vmatpush2.bf16.msra.mxu0 0
        %1269 = vmatprep.subr.bf16.mxu0 0
        %1270 = vmatpush2.bf16.msra.mxu0 0
        %1271 = vmatprep.subr.bf16.mxu0 0
        %1272 = vmatpush2.bf16.msra.mxu0 0
        %1273 = vmatprep.subr.bf16.mxu0 0
        %1274 = vmatpush2.bf16.msra.mxu0 0
        %1275 = vmatprep.mubr.bf16.mxu0 0
        %1276 = vmatmul.mubr.bf16.gmra.mxu0 %v1241
        %v1277 = vpop.f32.mrf.mxu0
        %v1278 = vadd.f32 %v1188, %v1277
        %v1279 = vpop.f32.mrf.mxu0
        %v1280 = vpop.f32.mrf.mxu0
        %v1281 = vadd.f32 %v1192, %v1280
        %v1282 = vpop.f32.mrf.mxu0
        %1283 = vdwg.mxu0
        %1284 = vset.pattern.permute.xlu0 3
        %1285 = vperm.xlu0 %1284, %v396
        %v1286 = vpop.permute.xlu0 %1285
        %1288 = vset.pattern.permute.xlu0 3
        %1289 = vperm.xlu0 %1288, %v397
        %v1290 = vpop.permute.xlu0 %1289
        %v1292 = vmul.f32 %v1286, %v1278
        %v1293 = vmul.f32 %v1290, %v1281
        %v1294 = vand.u32 2147483647, %v1292
        %vm1295 = vcmp.le.f32.partialorder %v1294, 0.7853982
        %vm1296 = vcmp.lt.s32.totalorder %v1292, 0
        %v1297 = vand.u32 %v1292, 2139095040
        %v1298 = vshrl.u32 %v1297, 23
        %v1299 = vsub.s32 %v1298, 127
        %v1300 = vand.u32 2147483647, %v1292
        %v1301 = vand.u32 %v1300, 8388607
        %v1302 = vor.u32 %v1301, 8388608
        %v1303 = vsub.s32 0, %v1302
        %v1304 = vadd.s32 %v1299, 1
        %vm1305 = vcmp.gt.s32.totalorder %v1304, 0
        %v1306 = vsel %vm1305, %v1304, 0
        %v1307 = vshrl.u32 %v1306, 5
        %v1308 = vand.u32 %v1306, 31
        %v1309 = vsub.s32 32, %v1308
        %v1310 = vshrl.u32 683565275, %v1309
        %v1311 = vshll.u32 683565275, %v1308
        %v1312 = vshrl.u32 2475754826, %v1309
        %v1313 = vor.u32 %v1311, %v1312
        %v1314 = vshll.u32 2475754826, %v1308
        %v1315 = vshrl.u32 2131351028, %v1309
        %v1316 = vor.u32 %v1314, %v1315
        %v1317 = vshll.u32 2131351028, %v1308
        %v1318 = vshrl.u32 2102212464, %v1309
        %v1319 = vor.u32 %v1317, %v1318
        %v1320 = vshll.u32 2102212464, %v1308
        %v1321 = vshrl.u32 920167782, %v1309
        %v1322 = vor.u32 %v1320, %v1321
        %v1323 = vshll.u32 920167782, %v1308
        %v1324 = vshrl.u32 1326507024, %v1309
        %v1325 = vor.u32 %v1323, %v1324
        %vm1326 = vcmp.lt.s32.totalorder %v1307, 1
        %vm1327 = vcmp.lt.s32.totalorder %v1307, 2
        %vm1328 = vcmp.lt.s32.totalorder %v1307, 3
        %vm1329 = vcmp.lt.s32.totalorder %v1307, 4
        %v1330 = vsel %vm1326, %v1310, %v1313
        %v1331 = vsel %vm1329, %v1319, 2102212464
        %v1332 = vsel %vm1328, %v1316, %v1331
        %v1333 = vsel %vm1327, %v1330, %v1332
        %v1334 = vsel %vm1326, %v1313, %v1316
        %v1335 = vsel %vm1329, %v1322, 920167782
        %v1336 = vsel %vm1328, %v1319, %v1335
        %v1337 = vsel %vm1327, %v1334, %v1336
        %v1338 = vsel %vm1326, %v1316, %v1319
        %v1339 = vsel %vm1329, %v1325, 1326507024
        %v1340 = vsel %vm1328, %v1322, %v1339
        %v1341 = vsel %vm1327, %v1338, %v1340
        %v1342 = vshll.u32 %v1302, 8
        %v1343 = vmul.u32.u64.compose %v1342, %v1341
        %v1344 = vextract.low.u32 %v1343
        %v1345 = vextract.high.u32 %v1343
        %v1346 = vmul.u32.u64.compose %v1342, %v1337
        %v1347 = vextract.low.u32 %v1346
        %v1348 = vextract.high.u32 %v1346
        %v1349 = vmul.u32 %v1342, %v1333
        %v1350 = vadd.s32 %v1345, %v1347
        %vm1351 = vc.u32 %v1345, %v1347
        %v1352 = vadd.s32 %v1348, 1
        %v1353 = vsel %vm1351, %v1352, %v1348
        %v1354 = vadd.s32 %v1349, %v1353
        %v1355 = vadd.s32 %v1354, 536870912
        %v1356 = vshrl.u32 %v1355, 30
        %v1357 = vshll.u32 %v1356, 30
        %v1358 = vsub.s32 %v1354, %v1357
        %vm1359 = vcmp.lt.s32.totalorder %v1358, 0
        %v1360 = vsub.s32 0, %v1358
        %v1361 = vsel %vm1359, %v1360, %v1358
        %v1362 = vclz %v1361
        %v1363 = vsub.s32 %v1362, 2
        %vm1364 = vcmp.gt.s32.totalorder 0, %v1363
        %v1365 = vsel %vm1364, 0, %v1363
        %v1366 = vsub.s32 32, %v1365
        %v1367 = vshll.u32 %v1358, %v1365
        %v1368 = vshrl.u32 %v1350, %v1366
        %v1369 = vor.u32 %v1367, %v1368
        %v1370 = vsub.s32 4294967266, %v1365
        %v1371 = vadd.s32 %v1370, 127
        %v1372 = vshll.u32 %v1371, 23
        %v1373 = vor.u32 4788187, %v1372
        %v1374 = vand.u32 2147483647, %v1373
        %v1376 = vcvt.s32.f32 %v1369
        %v1377 = vmul.f32 %v1376, %v1374
        %v1378 = vxor.u32 %v1377, 2147483648
        %v1379 = vsel %vm1296, %v1378, %v1377
        %v1380 = vsub.s32 4, %v1356
        %v1381 = vsel %vm1296, %v1380, %v1356
        %v1382 = vsel %vm1295, %v1292, %v1379
        %v1383 = vsel %vm1295, 0, %v1381
        %v1384 = vcosq.f32.pop %v1382
        %v1385 = vsinq.f32.pop %v1382
        %vm1386 = vweird.f32 %v1292
        %v1387 = vadd.s32 %v1383, 3
        %v1388 = vand.u32 %v1387, 3
        %vm1389 = vcmp.lt.s32.totalorder %v1388, 2
        %vm1390 = vcmp.eq.s32.totalorder %v1388, 0
        %v1391 = vxor.u32 %v1385, 2147483648
        %v1392 = vsel %vm1390, %v1384, %v1391
        %vm1393 = vcmp.eq.s32.totalorder %v1388, 2
        %v1394 = vxor.u32 %v1384, 2147483648
        %v1395 = vsel %vm1393, %v1394, %v1385
        %v1396 = vsel %vm1389, %v1392, %v1395
        %v1397 = vsel %vm1386, nan, %v1396
        %v1398 = vand.u32 2147483647, %v1293
        %vm1399 = vcmp.le.f32.partialorder %v1398, 0.7853982
        %vm1400 = vcmp.lt.s32.totalorder %v1293, 0
        %v1401 = vand.u32 %v1293, 2139095040
        %v1402 = vshrl.u32 %v1401, 23
        %v1403 = vsub.s32 %v1402, 127
        %v1404 = vand.u32 2147483647, %v1293
        %v1405 = vand.u32 %v1404, 8388607
        %v1406 = vor.u32 %v1405, 8388608
        %v1407 = vsub.s32 0, %v1406
        %v1408 = vadd.s32 %v1403, 1
        %vm1409 = vcmp.gt.s32.totalorder %v1408, 0
        %v1410 = vsel %vm1409, %v1408, 0
        %v1411 = vshrl.u32 %v1410, 5
        %v1412 = vand.u32 %v1410, 31
        %v1413 = vsub.s32 32, %v1412
        %v1414 = vshrl.u32 683565275, %v1413
        %v1415 = vshll.u32 683565275, %v1412
        %v1416 = vshrl.u32 2475754826, %v1413
        %v1417 = vor.u32 %v1415, %v1416
        %v1418 = vshll.u32 2475754826, %v1412
        %v1419 = vshrl.u32 2131351028, %v1413
        %v1420 = vor.u32 %v1418, %v1419
        %v1421 = vshll.u32 2131351028, %v1412
        %v1422 = vshrl.u32 2102212464, %v1413
        %v1423 = vor.u32 %v1421, %v1422
        %v1424 = vshll.u32 2102212464, %v1412
        %v1425 = vshrl.u32 920167782, %v1413
        %v1426 = vor.u32 %v1424, %v1425
        %v1427 = vshll.u32 920167782, %v1412
        %v1428 = vshrl.u32 1326507024, %v1413
        %v1429 = vor.u32 %v1427, %v1428
        %vm1430 = vcmp.lt.s32.totalorder %v1411, 1
        %vm1431 = vcmp.lt.s32.totalorder %v1411, 2
        %vm1432 = vcmp.lt.s32.totalorder %v1411, 3
        %vm1433 = vcmp.lt.s32.totalorder %v1411, 4
        %v1434 = vsel %vm1430, %v1414, %v1417
        %v1435 = vsel %vm1433, %v1423, 2102212464
        %v1436 = vsel %vm1432, %v1420, %v1435
        %v1437 = vsel %vm1431, %v1434, %v1436
        %v1438 = vsel %vm1430, %v1417, %v1420
        %v1439 = vsel %vm1433, %v1426, 920167782
        %v1440 = vsel %vm1432, %v1423, %v1439
        %v1441 = vsel %vm1431, %v1438, %v1440
        %v1442 = vsel %vm1430, %v1420, %v1423
        %v1443 = vsel %vm1433, %v1429, 1326507024
        %v1444 = vsel %vm1432, %v1426, %v1443
        %v1445 = vsel %vm1431, %v1442, %v1444
        %v1446 = vshll.u32 %v1406, 8
        %v1447 = vmul.u32.u64.compose %v1446, %v1445
        %v1448 = vextract.low.u32 %v1447
        %v1449 = vextract.high.u32 %v1447
        %v1450 = vmul.u32.u64.compose %v1446, %v1441
        %v1451 = vextract.low.u32 %v1450
        %v1452 = vextract.high.u32 %v1450
        %v1453 = vmul.u32 %v1446, %v1437
        %v1454 = vadd.s32 %v1449, %v1451
        %vm1455 = vc.u32 %v1449, %v1451
        %v1456 = vadd.s32 %v1452, 1
        %v1457 = vsel %vm1455, %v1456, %v1452
        %v1458 = vadd.s32 %v1453, %v1457
        %v1459 = vadd.s32 %v1458, 536870912
        %v1460 = vshrl.u32 %v1459, 30
        %v1461 = vshll.u32 %v1460, 30
        %v1462 = vsub.s32 %v1458, %v1461
        %vm1463 = vcmp.lt.s32.totalorder %v1462, 0
        %v1464 = vsub.s32 0, %v1462
        %v1465 = vsel %vm1463, %v1464, %v1462
        %v1466 = vclz %v1465
        %v1467 = vsub.s32 %v1466, 2
        %vm1468 = vcmp.gt.s32.totalorder 0, %v1467
        %v1469 = vsel %vm1468, 0, %v1467
        %v1470 = vsub.s32 32, %v1469
        %v1471 = vshll.u32 %v1462, %v1469
        %v1472 = vshrl.u32 %v1454, %v1470
        %v1473 = vor.u32 %v1471, %v1472
        %v1474 = vsub.s32 4294967266, %v1469
        %v1475 = vadd.s32 %v1474, 127
        %v1476 = vshll.u32 %v1475, 23
        %v1477 = vor.u32 4788187, %v1476
        %v1478 = vand.u32 2147483647, %v1477
        %v1480 = vcvt.s32.f32 %v1473
        %v1481 = vmul.f32 %v1480, %v1478
        %v1482 = vxor.u32 %v1481, 2147483648
        %v1483 = vsel %vm1400, %v1482, %v1481
        %v1484 = vsub.s32 4, %v1460
        %v1485 = vsel %vm1400, %v1484, %v1460
        %v1486 = vsel %vm1399, %v1293, %v1483
        %v1487 = vsel %vm1399, 0, %v1485
        %v1488 = vcosq.f32.pop %v1486
        %v1489 = vsinq.f32.pop %v1486
        %vm1490 = vweird.f32 %v1293
        %v1491 = vadd.s32 %v1487, 3
        %v1492 = vand.u32 %v1491, 3
        %vm1493 = vcmp.lt.s32.totalorder %v1492, 2
        %vm1494 = vcmp.eq.s32.totalorder %v1492, 0
        %v1495 = vxor.u32 %v1489, 2147483648
        %v1496 = vsel %vm1494, %v1488, %v1495
        %vm1497 = vcmp.eq.s32.totalorder %v1492, 2
        %v1498 = vxor.u32 %v1488, 2147483648
        %v1499 = vsel %vm1497, %v1498, %v1489
        %v1500 = vsel %vm1493, %v1496, %v1499
        %v1501 = vsel %vm1490, nan, %v1500
        %v1502 = vmul.f32 %v1397, %v1397
        %v1503 = vmul.f32 %v1501, %v1501
        %1504 = vset.pattern.permute.xlu0 4
        %1505 = vperm.xlu0 %1504, %v396
        %v1506 = vpop.permute.xlu0 %1505
        %1508 = vset.pattern.permute.xlu0 4
        %1509 = vperm.xlu0 %1508, %v397
        %v1510 = vpop.permute.xlu0 %1509
        %v1512 = vmul.f32 %v1506, %v1502
        %v1513 = vmul.f32 %v1510, %v1503
        %v1514 = vadd.f32 %v1278, %v1512
        %v1515 = vadd.f32 %v1281, %v1513
        %v1516 = vld [vmem:[%s4] sm:$0xf]
        %v1517 = vld [vmem:[%s4 + $0x4] sm:$0xf]
        %v1518 = vpack.c.bf16 %v1515, %v1514
        %1519 = vset.pattern.permute.xlu0 5
        %1520 = vperm.xlu0 %1519, %v396
        %v1521 = vpop.permute.xlu0 %1520
        %1523 = vset.pattern.permute.xlu0 5
        %1524 = vperm.xlu0 %1523, %v397
        %v1525 = vpop.permute.xlu0 %1524
        %v1529 = vunpack.c.l.b16 %v1516
        %v1530 = vunpack.c.l.b16 %v1517
        %v1531 = vpack.c.b16 %v1530, %v1529
        %vm1532 = vcmask 130048
        %v1534 = vsel %vm1532, %v1531, 0
        %1536 = vmatprep.subr.bf16.mxu0 0
        %1537 = vmatpush1.bf16.msra.mxu0 0
        %1538 = vmatprep.subr.bf16.mxu0 0
        %1539 = vmatpush1.bf16.msra.mxu0 0
        %1540 = vmatprep.subr.bf16.mxu0 0
        %1541 = vmatpush1.bf16.msra.mxu0 0
        %1542 = vmatprep.subr.bf16.mxu0 0
        %1543 = vmatpush1.bf16.msra.mxu0 0
        %1544 = vmatprep.subr.bf16.mxu0 0
        %1545 = vmatpush1.bf16.msra.mxu0 0
        %1546 = vmatprep.subr.bf16.mxu0 0
        %1547 = vmatpush1.bf16.msra.mxu0 0
        %1548 = vmatprep.subr.bf16.mxu0 0
        %1549 = vmatpush1.bf16.msra.mxu0 0
        %1550 = vmatprep.subr.bf16.mxu0 0
        %1551 = vmatpush1.bf16.msra.mxu0 %v1518
        %1552 = vmatprep.subr.bf16.mxu0 0
        %1553 = vmatpush2.bf16.msra.mxu0 0
        %1554 = vmatprep.subr.bf16.mxu0 0
        %1555 = vmatpush2.bf16.msra.mxu0 0
        %1556 = vmatprep.subr.bf16.mxu0 0
        %1557 = vmatpush2.bf16.msra.mxu0 0
        %1558 = vmatprep.subr.bf16.mxu0 0
        %1559 = vmatpush2.bf16.msra.mxu0 0
        %1560 = vmatprep.subr.bf16.mxu0 0
        %1561 = vmatpush2.bf16.msra.mxu0 0
        %1562 = vmatprep.subr.bf16.mxu0 0
        %1563 = vmatpush2.bf16.msra.mxu0 0
        %1564 = vmatprep.subr.bf16.mxu0 0
        %1565 = vmatpush2.bf16.msra.mxu0 0
        %1566 = vmatprep.subr.bf16.mxu0 0
        %1567 = vmatpush2.bf16.msra.mxu0 0
        %1568 = vmatprep.mubr.bf16.mxu0 0
        %1569 = vmatmul.mubr.bf16.gmra.mxu0 %v1534
        %v1570 = vpop.f32.mrf.mxu0
        %v1571 = vadd.f32 %v1521, %v1570
        %v1572 = vpop.f32.mrf.mxu0
        %v1573 = vpop.f32.mrf.mxu0
        %v1574 = vadd.f32 %v1525, %v1573
        %v1575 = vpop.f32.mrf.mxu0
        %1576 = vdwg.mxu0
        %v1577 = vadd.f32 %v398, %v1571
        %v1578 = vadd.f32 %v399, %v1574
        %1579 = vst [vmem:[%s387] sm:$0xff] %v1577
        %1580 = vst [vmem:[%s387 + $0x8] sm:$0xff] %v1578
        %s1581 = sand.u32 %s207, 1
        %s1582 = scalar_lea.sflag [#allocation5], %s1581
        %s1583 = sand.u32 %s207, 1
        %s1584 = smul.addr %s1583, 16
        %s1585 = scalar_lea.vmem [#allocation9], %s1584
        // Predicated region
        $region57: #{tpu_custom_call.1} parent=43 // pred_check
          %p1586 = pneg %p217
        $region58: #{tpu_custom_call.1} parent=43 // pred_check_branch
          %1588 = sbr.rel (%p1586) target = $region60
        $region59: #{tpu_custom_call.1} parent=43 // pred_region
          %s1590 = ssub.s32 256, 256
          %1591 = vsyncadd %s1582, %s1590
          %s1592 = smul.addr %s30, 2
          %s1593 = sadd.s32 %s31, %s1592
          %s1594 = smul.addr %s1593, 128
          %s1595 = scalar_lea.hbm %s6, %s1594
          %s1596 = sshll.u32 %s1585, 4
          %s1597 = int_to_ptr.vmem [resolvable:$true] %s1596
          %1602 = dma.vmem_to_hbm [thread:$0]  %s1597, 256, %s1595, %s1582, 128, 128, 8
        $region60: #{tpu_custom_call.1} parent=43 // pred_fallthru
          _
      $region44: #{tpu_custom_call.1} parent=5 // pred_fallthru
        _
      %p1603 = scmp.le.s32.totalorder 2, %s21
      // Predicated region
      $region61: #{tpu_custom_call.1} parent=5 // pred_check
        %p1604 = pneg %p1603
      $region62: #{tpu_custom_call.1} parent=5 // pred_check_branch
        %1606 = sbr.rel (%p1604) target = $region64
      $region63: #{tpu_custom_call.1} parent=5 // pred_region
        %s1607 = ssub.s32 %s21, 2
        // Predicated region
        $region65: #{tpu_custom_call.1} parent=63 // pred_check
          %p1608 = pneg %p223
        $region66: #{tpu_custom_call.1} parent=63 // pred_check_branch
          %1610 = sbr.rel (%p1608) target = $region68
        $region67: #{tpu_custom_call.1} parent=63 // pred_region
          %s1611 = sand.u32 %s208, 1
          %s1612 = scalar_lea.sflag [#allocation5], %s1611
          %s1613 = sand.u32 %s208, 1
          %s1614 = smul.addr %s1613, 16
          %s1615 = scalar_lea.vmem [#allocation9], %s1614
          %1616 = dma.done %s1612, 256
        $region68: #{tpu_custom_call.1} parent=63 // pred_fallthru
          _
      $region64: #{tpu_custom_call.1} parent=5 // pred_fallthru
        _
    $region6: #{tpu_custom_call.1} parent=1 // loop_footer
      %s25 = sadd.s32 1, %s21
    $region7: #{tpu_custom_call.1} parent=1 // loop_footer_branch
      %20 = sbr.rel target = $region3
    $region8: #{tpu_custom_call.1} parent=1 // loop_exit
      _
    %1617 = vsyncpa [#allocation4], 1
    %s1618 = scalar_lea.sflag [#allocation4], 1
    %1619 = vsyncpa %s1618, 1
    %1620 = vsyncpa [#allocation7], 1
    %s1621 = scalar_lea.sflag [#allocation7], 1
    %1622 = vsyncpa %s1621, 1
    %1623 = vsyncpa [#allocation5], 1
    %s1624 = scalar_lea.sflag [#allocation5], 1
    %1625 = vsyncpa %s1624, 1

</llo_original>
